<compile_context>
chip_gen: v5e
topology: v5e:2x2
jax: 0.10.0
libtpu: 0.0.40
codegen_flags: <defaults>
</compile_context>

<pallas_src>
import jax
import jax.numpy as jnp
from jax.experimental import pallas as pl
from jax.experimental.pallas import tpu as pltpu


def _round_up(x, m):
    return ((x + m - 1) // m) * m


def _physical_vmem_bytes():
    try:
        return int(pltpu.get_tpu_info().vmem_capacity_bytes)
    except Exception:
        return 64 << 20  # conservative: v7x per-TensorCore VMEM


# ----------------------------------------------------------------------------
# Kernel
# ----------------------------------------------------------------------------
def _build_kernel(*, n_deep, k_pad):
    """n_deep = number of (H,H) hidden layers after the first hidden layer.
    k_pad = 128-aligned width of each of the loc / scale output blocks."""

    def kernel(idx_ref, side_ref, table_ref, bne_t_ref,
               w_emb_ref, w_rd_ref, w_side_ref, c0_ref, *rest):
        if n_deep > 0:
            w_deep_ref, c_deep_ref, wo_ref, co_ref, out_ref = rest
        else:
            wo_ref, co_ref, out_ref = rest

        idx = idx_ref[...]                               # (Bt, L) int32
        Bt, L = idx.shape
        V1p = table_ref.shape[0]                         # lane-padded vocab+1

        # ---- embedding bag: counts(idx) @ (table * bn_scale) -----------------
        # (1, V1p) iota (replicated across sublanes), int32 accumulation,
        # single cast to the matmul dtype after the loop.
        vocab_iota = jax.lax.broadcasted_iota(jnp.int32, (1, V1p), 1)
        counts = jnp.zeros((Bt, V1p), jnp.int32)
        for l in range(L):                               # static unroll
            counts = counts + (idx[:, l:l + 1] == vocab_iota).astype(jnp.int32)
        # bf16 integers are exact up to 256; per-element counts are <= L.
        cnt_dtype = jnp.bfloat16 if L <= 256 else jnp.float32
        counts_m = counts.astype(cnt_dtype)

        # read_depth = (idx > 0).sum(-1, keepdim=True)   (padding index 0 excluded)
        rd = jnp.sum((idx > 0).astype(jnp.float32), axis=1, keepdims=True)
        inv_rd = pl.reciprocal(rd, approx=True)          # EUP slot
        rd_log = jnp.log(rd)
        # NOTE: rows with rd == 0 produce Inf/NaN, matching the PyTorch reference
        # (padded batch rows are sliced off in the wrapper).

        table = table_ref[...]
        if cnt_dtype is jnp.float32:
            table = table.astype(jnp.float32)
        emb_sum = jnp.dot(counts_m, table,
                          preferred_element_type=jnp.float32)          # (Bt, Hp)
        emb = emb_sum * inv_rd + bne_t_ref[...]          # embedding_bn (eval, folded)

        # ---- first hidden layer: Linear(+BN folded) + ReLU -------------------
        z = jnp.dot(emb.astype(jnp.bfloat16), w_emb_ref[...],
                    preferred_element_type=jnp.float32)                 # (Bt, Hp)
        z = z + rd_log * w_rd_ref[...]                   # (Bt,1)*(1,Hp) VPU FMA
        side = side_ref[...]                             # (Bt, C+X)
        w_side = w_side_ref[...]                         # (C+X, Hp)
        for f in range(side.shape[1]):                   # tiny-K -> VPU FMAs
            z = z + side[:, f:f + 1] * w_side[f:f + 1, :]
        h = jnp.maximum(z + c0_ref[...], 0.0)            # (+Dropout = id in eval)

        # ---- deeper hidden layers --------------------------------------------
        for i in range(n_deep):
            z = jnp.dot(h.astype(jnp.bfloat16), w_deep_ref[i],
                        preferred_element_type=jnp.float32)
            h = jnp.maximum(z + c_deep_ref[i:i + 1, :], 0.0)

        # ---- skip connection + output layer (Linear+BN folded) ---------------
        h = h + emb
        x = jnp.dot(h.astype(jnp.bfloat16), wo_ref[...],
                    preferred_element_type=jnp.float32) + co_ref[...]   # (Bt, 2*Kp)

        # theta_loc lanes pass through; softplus only on the 128-aligned scale
        # block (no lane iota / select, half the transcendental work).
        out_ref[:, :k_pad] = x[:, :k_pad]
        xs = x[:, k_pad:]
        out_ref[:, k_pad:] = jnp.maximum(xs, 0.0) + jnp.log(1.0 + jnp.exp(-jnp.abs(xs)))

    return kernel


# ----------------------------------------------------------------------------
# Wrapper: parameter folding + pallas_call
# ----------------------------------------------------------------------------
def fold_params(p):
    """One-time wrapper-side preprocessing: fold eval-BN and biases, cast matmul
    weights to bf16, and zero-pad V1 / E / H / output width to lane multiples."""
    f32, bf16 = jnp.float32, jnp.bfloat16
    K = p["num_topics"]
    table = p["table"]
    V1, E = table.shape
    H = p["w_emb"].shape[1]
    assert E == H, "skip connection requires embedding_size == hidden"
    V1p = _round_up(V1, 128)
    Hp = _round_up(H, 128)
    Kp = _round_up(K, 128)

    def padc(a, rows, cols):                              # zero-pad 2D -> (rows, cols)
        return jnp.zeros((rows, cols), f32).at[:a.shape[0], :a.shape[1]].set(
            a.astype(f32))

    # embedding_bn scale folded into the table (padding row 0 stays zero).
    table_s = padc(table * p["bne_scale"], V1p, Hp).astype(bf16)        # (V1p, Hp)
    bne_t = padc(p["bne_shift"], 1, Hp)                                 # (1, Hp)

    s0, t0, b0 = p["s0"], p["t0"], p["b0"]
    w_emb_s = padc(p["w_emb"] * s0, Hp, Hp).astype(bf16)                # (Hp, Hp)
    w_rd_s = padc(p["w_rd"] * s0, 1, Hp)                                # (1, Hp)
    w_side_raw = jnp.concatenate([p["w_cov"], p["w_ext"]], 0) * s0
    S = w_side_raw.shape[0]
    w_side_s = padc(w_side_raw, S, Hp)                                  # (S, Hp)
    c0 = padc(b0 * s0 + t0, 1, Hp)                                      # (1, Hp)

    deep_w, deep_c = [], []
    for (w, b, s, t) in p["deep"]:
        deep_w.append(padc(w * s, Hp, Hp).astype(bf16))
        deep_c.append(padc(b * s + t, 1, Hp)[0])

    # output layer: loc and scale get their own 128-aligned lane blocks.
    wo = p["wo"] * p["so"]                                              # (H, 2K)
    co = p["bo"] * p["so"] + p["to"]                                    # (1, 2K)
    wo_p = jnp.zeros((Hp, 2 * Kp), f32)
    wo_p = wo_p.at[:H, :K].set(wo[:, :K]).at[:H, Kp:Kp + K].set(wo[:, K:2 * K])
    wo_p = wo_p.astype(bf16)
    co_p = jnp.zeros((1, 2 * Kp), f32)
    co_p = co_p.at[:, :K].set(co[:, :K]).at[:, Kp:Kp + K].set(co[:, K:2 * K])

    kp = dict(num_topics=K, n_deep=len(deep_w), k_pad=Kp, h_pad=Hp, v1_pad=V1p,
              table=table_s, bne_t=bne_t, w_emb=w_emb_s, w_rd=w_rd_s,
              w_side=w_side_s, c0=c0, wo=wo_p, co=co_p)
    if deep_w:
        kp["w_deep"] = jnp.stack(deep_w)                                # (nD, Hp, Hp)
        kp["c_deep"] = jnp.stack(deep_c)                                # (nD, Hp)
    return kp


def dan_skip_encoder_forward(idx, covariates, extra_features, kp, *, b_tile=256):
    """Eval forward. read_depth is recomputed in-kernel (calc_readdepth=True)."""
    B, L = idx.shape
    K, n_deep = kp["num_topics"], kp["n_deep"]
    Kp, Hp, V1p = kp["k_pad"], kp["h_pad"], kp["v1_pad"]
    No = 2 * Kp

    side = jnp.concatenate([covariates, extra_features], axis=1).astype(jnp.float32)
    S = side.shape[1]

    weight_names = ["table", "bne_t", "w_emb", "w_rd", "w_side", "c0"]
    if n_deep > 0:
        weight_names += ["w_deep", "c_deep"]
    weight_names += ["wo", "co"]
    weights = [kp[n] for n in weight_names]
    weight_bytes = sum(int(a.size) * a.dtype.itemsize for a in weights)

    # --- generation-aware VMEM budget -------------------------------------
    phys_vmem = _physical_vmem_bytes()
    cap = int(0.80 * phys_vmem)                    # headroom for Mosaic scratch

    def usage(bt, wmult):
        io = 2 * (bt * L * 4 + bt * S * 4 + bt * No * 4)     # double-buffered tiles
        work = bt * V1p * (4 + 2)                            # counts i32 + bf16 copy
        work += 8 * bt * Hp * 4 + 2 * bt * No * 4            # activations (generous)
        return wmult * weight_bytes + io + work

    # batch tile: >=2 grid steps when the batch allows (v7x megacore), 256/128
    # to fill the MXU on v6e/v7x, shrunk until the VMEM estimate fits.
    bt_cap = min(b_tile, max(8, _round_up(-(-B // 2), 8)))
    bt = 8
    for cand in sorted({256, 128, 64, 32, 16, 8, bt_cap}, reverse=True):
        if cand <= bt_cap and usage(cand, 1) <= cap:
            bt = cand
            break

    Bp = _round_up(B, bt)
    if Bp != B:
        idx = jnp.pad(idx, ((0, Bp - B), (0, 0)))
        side = jnp.pad(side, ((0, Bp - B), (0, 0)))

    kernel = _build_kernel(n_deep=n_deep, k_pad=Kp)

    batch2 = lambda i: (i, 0)
    const2 = lambda i: (0, 0)
    const3 = lambda i: (0, 0, 0)

    def call(single_buffer_weights):
        # Weights have constant block indices -> single-buffer them (Buffered(1));
        # fallback path omits pipeline_mode for older jax versions.
        wkw = dict(pipeline_mode=pl.Buffered(1)) if single_buffer_weights else {}
        in_specs = [pl.BlockSpec((bt, L), batch2),
                    pl.BlockSpec((bt, S), batch2)]
        for arr in weights:
            imap = const3 if arr.ndim == 3 else const2
            in_specs.append(pl.BlockSpec(arr.shape, imap, **wkw))

        wmult = 1 if single_buffer_weights else 2
        vmem_limit = int(min(cap, max(32 << 20, usage(bt, wmult) + (4 << 20))))

        return pl.pallas_call(
            kernel,
            grid=(Bp // bt,),
            out_shape=jax.ShapeDtypeStruct((Bp, No), jnp.float32),
            in_specs=in_specs,
            out_specs=pl.BlockSpec((bt, No), batch2),
            compiler_params=pltpu.CompilerParams(
                dimension_semantics=("parallel",),
                vmem_limit_bytes=vmem_limit),
        )(idx, side, *weights)

    try:
        out = jax.block_until_ready(call(True))
    except Exception:
        # pipeline_mode=pl.Buffered(1) unsupported on this jax version ->
        # default double-buffering (previously validated configuration).
        out = call(False)

    theta_loc = out[:B, :K]
    theta_scale = out[:B, Kp:Kp + K]
    return theta_loc, theta_scale


# ----------------------------------------------------------------------------
# Parameter initialization (PyTorch-style, f32) and pure-JAX reference
# ----------------------------------------------------------------------------
def init_params(key, *, num_endog_features, num_topics, hidden, num_layers,
                num_covariates, num_extra_features, embedding_size=None):
    if embedding_size is None:
        embedding_size = hidden
    assert embedding_size == hidden, "skip connection requires embedding_size == hidden"
    assert num_layers > 2
    E, H, K = embedding_size, hidden, num_topics
    V1 = num_endog_features + 1
    num_hidden = num_layers - 2
    keys = iter(jax.random.split(key, 64 + 8 * num_hidden))

    def nrm(shape, scale=0.05):
        return (scale * jax.random.normal(next(keys), shape)).astype(jnp.float32)

    def bn_fold(dim, eps=1e-5):
        # eval-mode BatchNorm1d folded into a per-feature affine (scale, shift)
        w = jax.random.uniform(next(keys), (1, dim), minval=0.5, maxval=1.5)
        b = nrm((1, dim), 0.1)
        rm = nrm((1, dim), 0.1)
        rv = jax.random.uniform(next(keys), (1, dim), minval=0.5, maxval=1.5)
        scale = w / jnp.sqrt(rv + eps)
        shift = b - rm * scale
        return scale.astype(jnp.float32), shift.astype(jnp.float32)

    table = nrm((V1, E), 0.1).at[0].set(0.0)        # padding_idx=0 -> zero row
    bne_scale, bne_shift = bn_fold(E)

    D_in = E + 1 + num_covariates + num_extra_features
    w0 = nrm((D_in, H))                              # Linear weights stored (in, out)
    params = dict(
        num_topics=K,
        table=table, bne_scale=bne_scale, bne_shift=bne_shift,
        w_emb=w0[:E], w_rd=w0[E:E + 1],
        w_cov=w0[E + 1:E + 1 + num_covariates],
        w_ext=w0[E + 1 + num_covariates:],
        b0=nrm((1, H)),
    )
    params["s0"], params["t0"] = bn_fold(H)

    deep = []
    for _ in range(num_hidden - 1):
        w = nrm((H, H)); b = nrm((1, H)); s, t = bn_fold(H)
        deep.append((w, b, s, t))
    params["deep"] = deep

    params["wo"] = nrm((H, 2 * K)); params["bo"] = nrm((1, 2 * K))
    params["so"], params["to"] = bn_fold(2 * K)
    return params


def reference_forward(idx, cov, ext, params):
    """Pure-JAX f32 reference mirroring the PyTorch eval forward."""
    table = params["table"]
    emb_sum = table[idx].sum(axis=1)
    rd = (idx > 0).sum(axis=1, keepdims=True).astype(jnp.float32)
    emb = (emb_sum / rd) * params["bne_scale"] + params["bne_shift"]
    w0 = jnp.concatenate([params["w_emb"], params["w_rd"],
                          params["w_cov"], params["w_ext"]], axis=0)
    h_in = jnp.concatenate([emb, jnp.log(rd), cov, ext], axis=1)
    h = jnp.maximum((h_in @ w0 + params["b0"]) * params["s0"] + params["t0"], 0.0)
    for (w, b, s, t) in params["deep"]:
        h = jnp.maximum((h @ w + b) * s + t, 0.0)
    x = ((h + emb) @ params["wo"] + params["bo"]) * params["so"] + params["to"]
    K = params["num_topics"]
    return x[:, :K], jax.nn.softplus(x[:, K:2 * K])


# ----------------------------------------------------------------------------
if __name__ == "__main__":
    B, L = 8, 16
    num_endog_features = 32
    num_topics = 4
    hidden = 32
    num_layers = 4              # -> 2 hidden layers + output layer
    num_covariates = 2
    num_extra_features = 3

    key = jax.random.PRNGKey(0)
    k_idx, k_cov, k_ext, k_par = jax.random.split(key, 4)
    idx = jax.random.randint(k_idx, (B, L), 0, num_endog_features + 1, dtype=jnp.int32)
    idx = idx.at[:, 0].set(jnp.maximum(idx[:, 0], 1))   # ensure read_depth > 0
    cov = jax.random.normal(k_cov, (B, num_covariates), dtype=jnp.float32)
    ext = jax.random.normal(k_ext, (B, num_extra_features), dtype=jnp.float32)

    params = init_params(k_par,
                         num_endog_features=num_endog_features,
                         num_topics=num_topics,
                         hidden=hidden,
                         num_layers=num_layers,
                         num_covariates=num_covariates,
                         num_extra_features=num_extra_features)
    kparams = fold_params(params)

    theta_loc, theta_scale = dan_skip_encoder_forward(idx, cov, ext, kparams)
    jax.block_until_ready((theta_loc, theta_scale))

    ref_loc, ref_scale = reference_forward(idx, cov, ext, params)
    # bf16 weights / bf16 matmul inputs (f32 accumulation) => loose-ish tolerance.
    assert jnp.allclose(theta_loc, ref_loc, atol=2e-2, rtol=2e-2), \
        float(jnp.max(jnp.abs(theta_loc - ref_loc)))
    assert jnp.allclose(theta_scale, ref_scale, atol=2e-2, rtol=2e-2), \
        float(jnp.max(jnp.abs(theta_scale - ref_scale)))
    print("KERNEL_OK")
</pallas_src>

<mosaic_0001>
module attributes {stable_mosaic.version = 11 : i64} {
  func.func @kernel(%arg0: i32, %arg1: memref<8x16xi32, #tpu.memory_space<vmem>>, %arg2: memref<8x5xf32, #tpu.memory_space<vmem>>, %arg3: memref<128x128xbf16, #tpu.memory_space<vmem>>, %arg4: memref<1x128xf32, #tpu.memory_space<vmem>>, %arg5: memref<128x128xbf16, #tpu.memory_space<vmem>>, %arg6: memref<1x128xf32, #tpu.memory_space<vmem>>, %arg7: memref<5x128xf32, #tpu.memory_space<vmem>>, %arg8: memref<1x128xf32, #tpu.memory_space<vmem>>, %arg9: memref<1x128x128xbf16, #tpu.memory_space<vmem>>, %arg10: memref<1x128xf32, #tpu.memory_space<vmem>>, %arg11: memref<128x256xbf16, #tpu.memory_space<vmem>>, %arg12: memref<1x256xf32, #tpu.memory_space<vmem>>, %arg13: memref<8x256xf32, #tpu.memory_space<vmem>>) attributes {dimension_semantics = [#tpu.dimension_semantics<parallel>], iteration_bounds = array<i64: 1>, scalar_prefetch = 0 : i64, scratch_operands = 0 : i64, tpu.core_type = #tpu.core_type<tc>, window_params = [{transform_indices = @transform_0, window_bounds = array<i64: 8, 16>}, {transform_indices = @transform_1, window_bounds = array<i64: 8, 5>}, {pipeline_mode = #tpu.pipeline_mode<synchronous>, transform_indices = @transform_2, window_bounds = array<i64: 128, 128>}, {pipeline_mode = #tpu.pipeline_mode<synchronous>, transform_indices = @transform_3, window_bounds = array<i64: 1, 128>}, {pipeline_mode = #tpu.pipeline_mode<synchronous>, transform_indices = @transform_4, window_bounds = array<i64: 128, 128>}, {pipeline_mode = #tpu.pipeline_mode<synchronous>, transform_indices = @transform_5, window_bounds = array<i64: 1, 128>}, {pipeline_mode = #tpu.pipeline_mode<synchronous>, transform_indices = @transform_6, window_bounds = array<i64: 5, 128>}, {pipeline_mode = #tpu.pipeline_mode<synchronous>, transform_indices = @transform_7, window_bounds = array<i64: 1, 128>}, {pipeline_mode = #tpu.pipeline_mode<synchronous>, transform_indices = @transform_8, window_bounds = array<i64: 1, 128, 128>}, {pipeline_mode = #tpu.pipeline_mode<synchronous>, transform_indices = @transform_9, window_bounds = array<i64: 1, 128>}, {pipeline_mode = #tpu.pipeline_mode<synchronous>, transform_indices = @transform_10, window_bounds = array<i64: 128, 256>}, {pipeline_mode = #tpu.pipeline_mode<synchronous>, transform_indices = @transform_11, window_bounds = array<i64: 1, 256>}, {transform_indices = @transform_12, window_bounds = array<i64: 8, 256>}]} {
    %c0 = arith.constant 0 : index
    %c0_0 = arith.constant 0 : index
    %0 = vector.load %arg1[%c0, %c0_0] : memref<8x16xi32, #tpu.memory_space<vmem>>, vector<8x16xi32>
    %1 = tpu.iota {dimensions = array<i32: 1>} : vector<1x128xi32>
    %c0_i32 = arith.constant 0 : i32
    %2 = vector.broadcast %c0_i32 : i32 to vector<8x128xi32>
    %3 = vector.extract_strided_slice %0 {offsets = [0, 0], sizes = [8, 1], strides = [1, 1]} : vector<8x16xi32> to vector<8x1xi32>
    %4 = vector.broadcast %3 : vector<8x1xi32> to vector<8x128xi32>
    %5 = vector.broadcast %1 : vector<1x128xi32> to vector<8x128xi32>
    %6 = arith.cmpi eq, %4, %5 : vector<8x128xi32>
    %7 = arith.extui %6 : vector<8x128xi1> to vector<8x128xi32>
    %8 = arith.addi %2, %7 : vector<8x128xi32>
    %9 = vector.extract_strided_slice %0 {offsets = [0, 1], sizes = [8, 1], strides = [1, 1]} : vector<8x16xi32> to vector<8x1xi32>
    %10 = vector.broadcast %9 : vector<8x1xi32> to vector<8x128xi32>
    %11 = vector.broadcast %1 : vector<1x128xi32> to vector<8x128xi32>
    %12 = arith.cmpi eq, %10, %11 : vector<8x128xi32>
    %13 = arith.extui %12 : vector<8x128xi1> to vector<8x128xi32>
    %14 = arith.addi %8, %13 : vector<8x128xi32>
    %15 = vector.extract_strided_slice %0 {offsets = [0, 2], sizes = [8, 1], strides = [1, 1]} : vector<8x16xi32> to vector<8x1xi32>
    %16 = vector.broadcast %15 : vector<8x1xi32> to vector<8x128xi32>
    %17 = vector.broadcast %1 : vector<1x128xi32> to vector<8x128xi32>
    %18 = arith.cmpi eq, %16, %17 : vector<8x128xi32>
    %19 = arith.extui %18 : vector<8x128xi1> to vector<8x128xi32>
    %20 = arith.addi %14, %19 : vector<8x128xi32>
    %21 = vector.extract_strided_slice %0 {offsets = [0, 3], sizes = [8, 1], strides = [1, 1]} : vector<8x16xi32> to vector<8x1xi32>
    %22 = vector.broadcast %21 : vector<8x1xi32> to vector<8x128xi32>
    %23 = vector.broadcast %1 : vector<1x128xi32> to vector<8x128xi32>
    %24 = arith.cmpi eq, %22, %23 : vector<8x128xi32>
    %25 = arith.extui %24 : vector<8x128xi1> to vector<8x128xi32>
    %26 = arith.addi %20, %25 : vector<8x128xi32>
    %27 = vector.extract_strided_slice %0 {offsets = [0, 4], sizes = [8, 1], strides = [1, 1]} : vector<8x16xi32> to vector<8x1xi32>
    %28 = vector.broadcast %27 : vector<8x1xi32> to vector<8x128xi32>
    %29 = vector.broadcast %1 : vector<1x128xi32> to vector<8x128xi32>
    %30 = arith.cmpi eq, %28, %29 : vector<8x128xi32>
    %31 = arith.extui %30 : vector<8x128xi1> to vector<8x128xi32>
    %32 = arith.addi %26, %31 : vector<8x128xi32>
    %33 = vector.extract_strided_slice %0 {offsets = [0, 5], sizes = [8, 1], strides = [1, 1]} : vector<8x16xi32> to vector<8x1xi32>
    %34 = vector.broadcast %33 : vector<8x1xi32> to vector<8x128xi32>
    %35 = vector.broadcast %1 : vector<1x128xi32> to vector<8x128xi32>
    %36 = arith.cmpi eq, %34, %35 : vector<8x128xi32>
    %37 = arith.extui %36 : vector<8x128xi1> to vector<8x128xi32>
    %38 = arith.addi %32, %37 : vector<8x128xi32>
    %39 = vector.extract_strided_slice %0 {offsets = [0, 6], sizes = [8, 1], strides = [1, 1]} : vector<8x16xi32> to vector<8x1xi32>
    %40 = vector.broadcast %39 : vector<8x1xi32> to vector<8x128xi32>
    %41 = vector.broadcast %1 : vector<1x128xi32> to vector<8x128xi32>
    %42 = arith.cmpi eq, %40, %41 : vector<8x128xi32>
    %43 = arith.extui %42 : vector<8x128xi1> to vector<8x128xi32>
    %44 = arith.addi %38, %43 : vector<8x128xi32>
    %45 = vector.extract_strided_slice %0 {offsets = [0, 7], sizes = [8, 1], strides = [1, 1]} : vector<8x16xi32> to vector<8x1xi32>
    %46 = vector.broadcast %45 : vector<8x1xi32> to vector<8x128xi32>
    %47 = vector.broadcast %1 : vector<1x128xi32> to vector<8x128xi32>
    %48 = arith.cmpi eq, %46, %47 : vector<8x128xi32>
    %49 = arith.extui %48 : vector<8x128xi1> to vector<8x128xi32>
    %50 = arith.addi %44, %49 : vector<8x128xi32>
    %51 = vector.extract_strided_slice %0 {offsets = [0, 8], sizes = [8, 1], strides = [1, 1]} : vector<8x16xi32> to vector<8x1xi32>
    %52 = vector.broadcast %51 : vector<8x1xi32> to vector<8x128xi32>
    %53 = vector.broadcast %1 : vector<1x128xi32> to vector<8x128xi32>
    %54 = arith.cmpi eq, %52, %53 : vector<8x128xi32>
    %55 = arith.extui %54 : vector<8x128xi1> to vector<8x128xi32>
    %56 = arith.addi %50, %55 : vector<8x128xi32>
    %57 = vector.extract_strided_slice %0 {offsets = [0, 9], sizes = [8, 1], strides = [1, 1]} : vector<8x16xi32> to vector<8x1xi32>
    %58 = vector.broadcast %57 : vector<8x1xi32> to vector<8x128xi32>
    %59 = vector.broadcast %1 : vector<1x128xi32> to vector<8x128xi32>
    %60 = arith.cmpi eq, %58, %59 : vector<8x128xi32>
    %61 = arith.extui %60 : vector<8x128xi1> to vector<8x128xi32>
    %62 = arith.addi %56, %61 : vector<8x128xi32>
    %63 = vector.extract_strided_slice %0 {offsets = [0, 10], sizes = [8, 1], strides = [1, 1]} : vector<8x16xi32> to vector<8x1xi32>
    %64 = vector.broadcast %63 : vector<8x1xi32> to vector<8x128xi32>
    %65 = vector.broadcast %1 : vector<1x128xi32> to vector<8x128xi32>
    %66 = arith.cmpi eq, %64, %65 : vector<8x128xi32>
    %67 = arith.extui %66 : vector<8x128xi1> to vector<8x128xi32>
    %68 = arith.addi %62, %67 : vector<8x128xi32>
    %69 = vector.extract_strided_slice %0 {offsets = [0, 11], sizes = [8, 1], strides = [1, 1]} : vector<8x16xi32> to vector<8x1xi32>
    %70 = vector.broadcast %69 : vector<8x1xi32> to vector<8x128xi32>
    %71 = vector.broadcast %1 : vector<1x128xi32> to vector<8x128xi32>
    %72 = arith.cmpi eq, %70, %71 : vector<8x128xi32>
    %73 = arith.extui %72 : vector<8x128xi1> to vector<8x128xi32>
    %74 = arith.addi %68, %73 : vector<8x128xi32>
    %75 = vector.extract_strided_slice %0 {offsets = [0, 12], sizes = [8, 1], strides = [1, 1]} : vector<8x16xi32> to vector<8x1xi32>
    %76 = vector.broadcast %75 : vector<8x1xi32> to vector<8x128xi32>
    %77 = vector.broadcast %1 : vector<1x128xi32> to vector<8x128xi32>
    %78 = arith.cmpi eq, %76, %77 : vector<8x128xi32>
    %79 = arith.extui %78 : vector<8x128xi1> to vector<8x128xi32>
    %80 = arith.addi %74, %79 : vector<8x128xi32>
    %81 = vector.extract_strided_slice %0 {offsets = [0, 13], sizes = [8, 1], strides = [1, 1]} : vector<8x16xi32> to vector<8x1xi32>
    %82 = vector.broadcast %81 : vector<8x1xi32> to vector<8x128xi32>
    %83 = vector.broadcast %1 : vector<1x128xi32> to vector<8x128xi32>
    %84 = arith.cmpi eq, %82, %83 : vector<8x128xi32>
    %85 = arith.extui %84 : vector<8x128xi1> to vector<8x128xi32>
    %86 = arith.addi %80, %85 : vector<8x128xi32>
    %87 = vector.extract_strided_slice %0 {offsets = [0, 14], sizes = [8, 1], strides = [1, 1]} : vector<8x16xi32> to vector<8x1xi32>
    %88 = vector.broadcast %87 : vector<8x1xi32> to vector<8x128xi32>
    %89 = vector.broadcast %1 : vector<1x128xi32> to vector<8x128xi32>
    %90 = arith.cmpi eq, %88, %89 : vector<8x128xi32>
    %91 = arith.extui %90 : vector<8x128xi1> to vector<8x128xi32>
    %92 = arith.addi %86, %91 : vector<8x128xi32>
    %93 = vector.extract_strided_slice %0 {offsets = [0, 15], sizes = [8, 1], strides = [1, 1]} : vector<8x16xi32> to vector<8x1xi32>
    %94 = vector.broadcast %93 : vector<8x1xi32> to vector<8x128xi32>
    %95 = vector.broadcast %1 : vector<1x128xi32> to vector<8x128xi32>
    %96 = arith.cmpi eq, %94, %95 : vector<8x128xi32>
    %97 = arith.extui %96 : vector<8x128xi1> to vector<8x128xi32>
    %98 = arith.addi %92, %97 : vector<8x128xi32>
    %99 = arith.sitofp %98 : vector<8x128xi32> to vector<8x128xbf16>
    %c0_i32_1 = arith.constant 0 : i32
    %100 = vector.broadcast %c0_i32_1 : i32 to vector<8x16xi32>
    %101 = arith.cmpi sgt, %0, %100 : vector<8x16xi32>
    %102 = arith.extui %101 : vector<8x16xi1> to vector<8x16xi32>
    %103 = arith.sitofp %102 : vector<8x16xi32> to vector<8x16xf32>
    %cst = arith.constant dense<0.000000e+00> : vector<8xf32>
    %104 = vector.multi_reduction <add>, %103, %cst [1] : vector<8x16xf32> to vector<8xf32>
    %105 = vector.shape_cast %104 : vector<8xf32> to vector<8x1xf32>
    %106 = tpu.reciprocal %105 {approx = true} : vector<8x1xf32> -> vector<8x1xf32>
    %107 = math.log %105 : vector<8x1xf32>
    %c0_2 = arith.constant 0 : index
    %c0_3 = arith.constant 0 : index
    %108 = vector.load %arg3[%c0_2, %c0_3] : memref<128x128xbf16, #tpu.memory_space<vmem>>, vector<128x128xbf16>
    %cst_4 = arith.constant dense<0.000000e+00> : vector<8x128xf32>
    %109 = tpu.matmul %99, %108, %cst_4 {dimension_numbers = #tpu.dot_dimension_numbers<[1], [0], [0], [1], [0, 0, 1, 1], [], []>} : vector<8x128xbf16>, vector<128x128xbf16>, vector<8x128xf32> -> vector<8x128xf32>
    %110 = vector.broadcast %106 : vector<8x1xf32> to vector<8x128xf32>
    %111 = arith.mulf %109, %110 : vector<8x128xf32>
    %c0_5 = arith.constant 0 : index
    %c0_6 = arith.constant 0 : index
    %112 = vector.load %arg4[%c0_5, %c0_6] : memref<1x128xf32, #tpu.memory_space<vmem>>, vector<1x128xf32>
    %113 = vector.broadcast %112 : vector<1x128xf32> to vector<8x128xf32>
    %114 = arith.addf %111, %113 : vector<8x128xf32>
    %115 = arith.truncf %114 : vector<8x128xf32> to vector<8x128xbf16>
    %c0_7 = arith.constant 0 : index
    %c0_8 = arith.constant 0 : index
    %116 = vector.load %arg5[%c0_7, %c0_8] : memref<128x128xbf16, #tpu.memory_space<vmem>>, vector<128x128xbf16>
    %cst_9 = arith.constant dense<0.000000e+00> : vector<8x128xf32>
    %117 = tpu.matmul %115, %116, %cst_9 {dimension_numbers = #tpu.dot_dimension_numbers<[1], [0], [0], [1], [0, 0, 1, 1], [], []>} : vector<8x128xbf16>, vector<128x128xbf16>, vector<8x128xf32> -> vector<8x128xf32>
    %c0_10 = arith.constant 0 : index
    %c0_11 = arith.constant 0 : index
    %118 = vector.load %arg6[%c0_10, %c0_11] : memref<1x128xf32, #tpu.memory_space<vmem>>, vector<1x128xf32>
    %119 = vector.broadcast %107 : vector<8x1xf32> to vector<8x128xf32>
    %120 = vector.broadcast %118 : vector<1x128xf32> to vector<8x128xf32>
    %121 = arith.mulf %119, %120 : vector<8x128xf32>
    %122 = arith.addf %117, %121 : vector<8x128xf32>
    %c0_12 = arith.constant 0 : index
    %c0_13 = arith.constant 0 : index
    %123 = vector.load %arg2[%c0_12, %c0_13] : memref<8x5xf32, #tpu.memory_space<vmem>>, vector<8x5xf32>
    %c0_14 = arith.constant 0 : index
    %c0_15 = arith.constant 0 : index
    %124 = vector.load %arg7[%c0_14, %c0_15] : memref<5x128xf32, #tpu.memory_space<vmem>>, vector<5x128xf32>
    %125 = vector.extract_strided_slice %123 {offsets = [0, 0], sizes = [8, 1], strides = [1, 1]} : vector<8x5xf32> to vector<8x1xf32>
    %126 = vector.extract_strided_slice %124 {offsets = [0, 0], sizes = [1, 128], strides = [1, 1]} : vector<5x128xf32> to vector<1x128xf32>
    %127 = vector.broadcast %125 : vector<8x1xf32> to vector<8x128xf32>
    %128 = vector.broadcast %126 : vector<1x128xf32> to vector<8x128xf32>
    %129 = arith.mulf %127, %128 : vector<8x128xf32>
    %130 = arith.addf %122, %129 : vector<8x128xf32>
    %131 = vector.extract_strided_slice %123 {offsets = [0, 1], sizes = [8, 1], strides = [1, 1]} : vector<8x5xf32> to vector<8x1xf32>
    %132 = vector.extract_strided_slice %124 {offsets = [1, 0], sizes = [1, 128], strides = [1, 1]} : vector<5x128xf32> to vector<1x128xf32>
    %133 = vector.broadcast %131 : vector<8x1xf32> to vector<8x128xf32>
    %134 = vector.broadcast %132 : vector<1x128xf32> to vector<8x128xf32>
    %135 = arith.mulf %133, %134 : vector<8x128xf32>
    %136 = arith.addf %130, %135 : vector<8x128xf32>
    %137 = vector.extract_strided_slice %123 {offsets = [0, 2], sizes = [8, 1], strides = [1, 1]} : vector<8x5xf32> to vector<8x1xf32>
    %138 = vector.extract_strided_slice %124 {offsets = [2, 0], sizes = [1, 128], strides = [1, 1]} : vector<5x128xf32> to vector<1x128xf32>
    %139 = vector.broadcast %137 : vector<8x1xf32> to vector<8x128xf32>
    %140 = vector.broadcast %138 : vector<1x128xf32> to vector<8x128xf32>
    %141 = arith.mulf %139, %140 : vector<8x128xf32>
    %142 = arith.addf %136, %141 : vector<8x128xf32>
    %143 = vector.extract_strided_slice %123 {offsets = [0, 3], sizes = [8, 1], strides = [1, 1]} : vector<8x5xf32> to vector<8x1xf32>
    %144 = vector.extract_strided_slice %124 {offsets = [3, 0], sizes = [1, 128], strides = [1, 1]} : vector<5x128xf32> to vector<1x128xf32>
    %145 = vector.broadcast %143 : vector<8x1xf32> to vector<8x128xf32>
    %146 = vector.broadcast %144 : vector<1x128xf32> to vector<8x128xf32>
    %147 = arith.mulf %145, %146 : vector<8x128xf32>
    %148 = arith.addf %142, %147 : vector<8x128xf32>
    %149 = vector.extract_strided_slice %123 {offsets = [0, 4], sizes = [8, 1], strides = [1, 1]} : vector<8x5xf32> to vector<8x1xf32>
    %150 = vector.extract_strided_slice %124 {offsets = [4, 0], sizes = [1, 128], strides = [1, 1]} : vector<5x128xf32> to vector<1x128xf32>
    %151 = vector.broadcast %149 : vector<8x1xf32> to vector<8x128xf32>
    %152 = vector.broadcast %150 : vector<1x128xf32> to vector<8x128xf32>
    %153 = arith.mulf %151, %152 : vector<8x128xf32>
    %154 = arith.addf %148, %153 : vector<8x128xf32>
    %c0_16 = arith.constant 0 : index
    %c0_17 = arith.constant 0 : index
    %155 = vector.load %arg8[%c0_16, %c0_17] : memref<1x128xf32, #tpu.memory_space<vmem>>, vector<1x128xf32>
    %156 = vector.broadcast %155 : vector<1x128xf32> to vector<8x128xf32>
    %157 = arith.addf %154, %156 : vector<8x128xf32>
    %cst_18 = arith.constant 0.000000e+00 : f32
    %158 = vector.broadcast %cst_18 : f32 to vector<8x128xf32>
    %159 = arith.maximumf %157, %158 : vector<8x128xf32>
    %160 = arith.truncf %159 : vector<8x128xf32> to vector<8x128xbf16>
    %c0_19 = arith.constant 0 : index
    %c0_20 = arith.constant 0 : index
    %c0_21 = arith.constant 0 : index
    %161 = vector.load %arg9[%c0_19, %c0_20, %c0_21] : memref<1x128x128xbf16, #tpu.memory_space<vmem>>, vector<1x128x128xbf16>
    %162 = vector.shape_cast %161 : vector<1x128x128xbf16> to vector<128x128xbf16>
    %cst_22 = arith.constant dense<0.000000e+00> : vector<8x128xf32>
    %163 = tpu.matmul %160, %162, %cst_22 {dimension_numbers = #tpu.dot_dimension_numbers<[1], [0], [0], [1], [0, 0, 1, 1], [], []>} : vector<8x128xbf16>, vector<128x128xbf16>, vector<8x128xf32> -> vector<8x128xf32>
    %c0_23 = arith.constant 0 : index
    %c0_24 = arith.constant 0 : index
    %164 = vector.load %arg10[%c0_23, %c0_24] : memref<1x128xf32, #tpu.memory_space<vmem>>, vector<1x128xf32>
    %165 = vector.broadcast %164 : vector<1x128xf32> to vector<8x128xf32>
    %166 = arith.addf %163, %165 : vector<8x128xf32>
    %cst_25 = arith.constant 0.000000e+00 : f32
    %167 = vector.broadcast %cst_25 : f32 to vector<8x128xf32>
    %168 = arith.maximumf %166, %167 : vector<8x128xf32>
    %169 = arith.addf %168, %114 : vector<8x128xf32>
    %170 = arith.truncf %169 : vector<8x128xf32> to vector<8x128xbf16>
    %c0_26 = arith.constant 0 : index
    %c0_27 = arith.constant 0 : index
    %171 = vector.load %arg11[%c0_26, %c0_27] : memref<128x256xbf16, #tpu.memory_space<vmem>>, vector<128x256xbf16>
    %cst_28 = arith.constant dense<0.000000e+00> : vector<8x256xf32>
    %172 = tpu.matmul %170, %171, %cst_28 {dimension_numbers = #tpu.dot_dimension_numbers<[1], [0], [0], [1], [0, 0, 1, 1], [], []>} : vector<8x128xbf16>, vector<128x256xbf16>, vector<8x256xf32> -> vector<8x256xf32>
    %c0_29 = arith.constant 0 : index
    %c0_30 = arith.constant 0 : index
    %173 = vector.load %arg12[%c0_29, %c0_30] : memref<1x256xf32, #tpu.memory_space<vmem>>, vector<1x256xf32>
    %174 = vector.broadcast %173 : vector<1x256xf32> to vector<8x256xf32>
    %175 = arith.addf %172, %174 : vector<8x256xf32>
    %176 = vector.extract_strided_slice %175 {offsets = [0, 0], sizes = [8, 128], strides = [1, 1]} : vector<8x256xf32> to vector<8x128xf32>
    %c0_31 = arith.constant 0 : index
    %c0_32 = arith.constant 0 : index
    %177 = vector.load %arg13[%c0_31, %c0_32] : memref<8x256xf32, #tpu.memory_space<vmem>>, vector<8x128xf32>
    tpu.vector_store %arg13[%c0_31, %c0_32], %176 {strides = array<i32>} : memref<8x256xf32, #tpu.memory_space<vmem>>, vector<8x128xf32>,
    %178 = vector.extract_strided_slice %175 {offsets = [0, 128], sizes = [8, 128], strides = [1, 1]} : vector<8x256xf32> to vector<8x128xf32>
    %cst_33 = arith.constant 0.000000e+00 : f32
    %179 = vector.broadcast %cst_33 : f32 to vector<8x128xf32>
    %180 = arith.maximumf %178, %179 : vector<8x128xf32>
    %181 = math.absf %178 : vector<8x128xf32>
    %cst_34 = arith.constant 0.000000e+00 : f32
    %182 = vector.broadcast %cst_34 : f32 to vector<8x128xf32>
    %183 = arith.subf %182, %181 : vector<8x128xf32>
    %184 = math.exp %183 : vector<8x128xf32>
    %cst_35 = arith.constant 1.000000e+00 : f32
    %185 = vector.broadcast %cst_35 : f32 to vector<8x128xf32>
    %186 = arith.addf %185, %184 : vector<8x128xf32>
    %187 = math.log %186 : vector<8x128xf32>
    %188 = arith.addf %180, %187 : vector<8x128xf32>
    %c0_36 = arith.constant 0 : index
    %c128 = arith.constant 128 : index
    %189 = vector.load %arg13[%c0_36, %c128] : memref<8x256xf32, #tpu.memory_space<vmem>>, vector<8x128xf32>
    tpu.vector_store %arg13[%c0_36, %c128], %188 {strides = array<i32>} : memref<8x256xf32, #tpu.memory_space<vmem>>, vector<8x128xf32>,
    return
  }
  func.func @transform_0(%arg0: i32) -> (i32, i32) {
    %c0_i32 = arith.constant 0 : i32
    %c0_i32_0 = arith.constant 0 : i32
    return %arg0, %c0_i32 : i32, i32
  }
  func.func @transform_1(%arg0: i32) -> (i32, i32) {
    %c0_i32 = arith.constant 0 : i32
    %c0_i32_0 = arith.constant 0 : i32
    return %arg0, %c0_i32 : i32, i32
  }
  func.func @transform_2(%arg0: i32) -> (i32, i32) {
    %c0_i32 = arith.constant 0 : i32
    %c0_i32_0 = arith.constant 0 : i32
    %c0_i32_1 = arith.constant 0 : i32
    return %c0_i32, %c0_i32_0 : i32, i32
  }
  func.func @transform_3(%arg0: i32) -> (i32, i32) {
    %c0_i32 = arith.constant 0 : i32
    %c0_i32_0 = arith.constant 0 : i32
    %c0_i32_1 = arith.constant 0 : i32
    return %c0_i32, %c0_i32_0 : i32, i32
  }
  func.func @transform_4(%arg0: i32) -> (i32, i32) {
    %c0_i32 = arith.constant 0 : i32
    %c0_i32_0 = arith.constant 0 : i32
    %c0_i32_1 = arith.constant 0 : i32
    return %c0_i32, %c0_i32_0 : i32, i32
  }
  func.func @transform_5(%arg0: i32) -> (i32, i32) {
    %c0_i32 = arith.constant 0 : i32
    %c0_i32_0 = arith.constant 0 : i32
    %c0_i32_1 = arith.constant 0 : i32
    return %c0_i32, %c0_i32_0 : i32, i32
  }
  func.func @transform_6(%arg0: i32) -> (i32, i32) {
    %c0_i32 = arith.constant 0 : i32
    %c0_i32_0 = arith.constant 0 : i32
    %c0_i32_1 = arith.constant 0 : i32
    return %c0_i32, %c0_i32_0 : i32, i32
  }
  func.func @transform_7(%arg0: i32) -> (i32, i32) {
    %c0_i32 = arith.constant 0 : i32
    %c0_i32_0 = arith.constant 0 : i32
    %c0_i32_1 = arith.constant 0 : i32
    return %c0_i32, %c0_i32_0 : i32, i32
  }
  func.func @transform_8(%arg0: i32) -> (i32, i32, i32) {
    %c0_i32 = arith.constant 0 : i32
    %c0_i32_0 = arith.constant 0 : i32
    %c0_i32_1 = arith.constant 0 : i32
    %c0_i32_2 = arith.constant 0 : i32
    return %c0_i32, %c0_i32_0, %c0_i32_1 : i32, i32, i32
  }
  func.func @transform_9(%arg0: i32) -> (i32, i32) {
    %c0_i32 = arith.constant 0 : i32
    %c0_i32_0 = arith.constant 0 : i32
    %c0_i32_1 = arith.constant 0 : i32
    return %c0_i32, %c0_i32_0 : i32, i32
  }
  func.func @transform_10(%arg0: i32) -> (i32, i32) {
    %c0_i32 = arith.constant 0 : i32
    %c0_i32_0 = arith.constant 0 : i32
    %c0_i32_1 = arith.constant 0 : i32
    return %c0_i32, %c0_i32_0 : i32, i32
  }
  func.func @transform_11(%arg0: i32) -> (i32, i32) {
    %c0_i32 = arith.constant 0 : i32
    %c0_i32_0 = arith.constant 0 : i32
    %c0_i32_1 = arith.constant 0 : i32
    return %c0_i32, %c0_i32_0 : i32, i32
  }
  func.func @transform_12(%arg0: i32) -> (i32, i32) {
    %c0_i32 = arith.constant 0 : i32
    %c0_i32_0 = arith.constant 0 : i32
    return %arg0, %c0_i32 : i32, i32
  }
}

module attributes {stable_mosaic.version = 11 : i64} {
  func.func @kernel(%arg0: i32, %arg1: memref<8x16xi32, #tpu.memory_space<vmem>>, %arg2: memref<8x5xf32, #tpu.memory_space<vmem>>, %arg3: memref<128x128xbf16, #tpu.memory_space<vmem>>, %arg4: memref<1x128xf32, #tpu.memory_space<vmem>>, %arg5: memref<128x128xbf16, #tpu.memory_space<vmem>>, %arg6: memref<1x128xf32, #tpu.memory_space<vmem>>, %arg7: memref<5x128xf32, #tpu.memory_space<vmem>>, %arg8: memref<1x128xf32, #tpu.memory_space<vmem>>, %arg9: memref<1x128x128xbf16, #tpu.memory_space<vmem>>, %arg10: memref<1x128xf32, #tpu.memory_space<vmem>>, %arg11: memref<128x256xbf16, #tpu.memory_space<vmem>>, %arg12: memref<1x256xf32, #tpu.memory_space<vmem>>, %arg13: memref<8x256xf32, #tpu.memory_space<vmem>>) attributes {dimension_semantics = [#tpu.dimension_semantics<parallel>], iteration_bounds = array<i64: 1>, scalar_prefetch = 0 : i64, scratch_operands = 0 : i64, tpu.core_type = #tpu.core_type<tc>, window_params = [{transform_indices = @transform_0, window_bounds = array<i64: 8, 16>}, {transform_indices = @transform_1, window_bounds = array<i64: 8, 5>}, {pipeline_mode = #tpu.pipeline_mode<synchronous>, transform_indices = @transform_2, window_bounds = array<i64: 128, 128>}, {pipeline_mode = #tpu.pipeline_mode<synchronous>, transform_indices = @transform_3, window_bounds = array<i64: 1, 128>}, {pipeline_mode = #tpu.pipeline_mode<synchronous>, transform_indices = @transform_4, window_bounds = array<i64: 128, 128>}, {pipeline_mode = #tpu.pipeline_mode<synchronous>, transform_indices = @transform_5, window_bounds = array<i64: 1, 128>}, {pipeline_mode = #tpu.pipeline_mode<synchronous>, transform_indices = @transform_6, window_bounds = array<i64: 5, 128>}, {pipeline_mode = #tpu.pipeline_mode<synchronous>, transform_indices = @transform_7, window_bounds = array<i64: 1, 128>}, {pipeline_mode = #tpu.pipeline_mode<synchronous>, transform_indices = @transform_8, window_bounds = array<i64: 1, 128, 128>}, {pipeline_mode = #tpu.pipeline_mode<synchronous>, transform_indices = @transform_9, window_bounds = array<i64: 1, 128>}, {pipeline_mode = #tpu.pipeline_mode<synchronous>, transform_indices = @transform_10, window_bounds = array<i64: 128, 256>}, {pipeline_mode = #tpu.pipeline_mode<synchronous>, transform_indices = @transform_11, window_bounds = array<i64: 1, 256>}, {transform_indices = @transform_12, window_bounds = array<i64: 8, 256>}]} {
    %c0 = arith.constant 0 : index
    %c0_0 = arith.constant 0 : index
    %0 = vector.load %arg1[%c0, %c0_0] : memref<8x16xi32, #tpu.memory_space<vmem>>, vector<8x16xi32>
    %1 = tpu.iota {dimensions = array<i32: 1>} : vector<1x128xi32>
    %c0_i32 = arith.constant 0 : i32
    %2 = vector.broadcast %c0_i32 : i32 to vector<8x128xi32>
    %3 = vector.extract_strided_slice %0 {offsets = [0, 0], sizes = [8, 1], strides = [1, 1]} : vector<8x16xi32> to vector<8x1xi32>
    %4 = vector.broadcast %3 : vector<8x1xi32> to vector<8x128xi32>
    %5 = vector.broadcast %1 : vector<1x128xi32> to vector<8x128xi32>
    %6 = arith.cmpi eq, %4, %5 : vector<8x128xi32>
    %7 = arith.extui %6 : vector<8x128xi1> to vector<8x128xi32>
    %8 = arith.addi %2, %7 : vector<8x128xi32>
    %9 = vector.extract_strided_slice %0 {offsets = [0, 1], sizes = [8, 1], strides = [1, 1]} : vector<8x16xi32> to vector<8x1xi32>
    %10 = vector.broadcast %9 : vector<8x1xi32> to vector<8x128xi32>
    %11 = vector.broadcast %1 : vector<1x128xi32> to vector<8x128xi32>
    %12 = arith.cmpi eq, %10, %11 : vector<8x128xi32>
    %13 = arith.extui %12 : vector<8x128xi1> to vector<8x128xi32>
    %14 = arith.addi %8, %13 : vector<8x128xi32>
    %15 = vector.extract_strided_slice %0 {offsets = [0, 2], sizes = [8, 1], strides = [1, 1]} : vector<8x16xi32> to vector<8x1xi32>
    %16 = vector.broadcast %15 : vector<8x1xi32> to vector<8x128xi32>
    %17 = vector.broadcast %1 : vector<1x128xi32> to vector<8x128xi32>
    %18 = arith.cmpi eq, %16, %17 : vector<8x128xi32>
    %19 = arith.extui %18 : vector<8x128xi1> to vector<8x128xi32>
    %20 = arith.addi %14, %19 : vector<8x128xi32>
    %21 = vector.extract_strided_slice %0 {offsets = [0, 3], sizes = [8, 1], strides = [1, 1]} : vector<8x16xi32> to vector<8x1xi32>
    %22 = vector.broadcast %21 : vector<8x1xi32> to vector<8x128xi32>
    %23 = vector.broadcast %1 : vector<1x128xi32> to vector<8x128xi32>
    %24 = arith.cmpi eq, %22, %23 : vector<8x128xi32>
    %25 = arith.extui %24 : vector<8x128xi1> to vector<8x128xi32>
    %26 = arith.addi %20, %25 : vector<8x128xi32>
    %27 = vector.extract_strided_slice %0 {offsets = [0, 4], sizes = [8, 1], strides = [1, 1]} : vector<8x16xi32> to vector<8x1xi32>
    %28 = vector.broadcast %27 : vector<8x1xi32> to vector<8x128xi32>
    %29 = vector.broadcast %1 : vector<1x128xi32> to vector<8x128xi32>
    %30 = arith.cmpi eq, %28, %29 : vector<8x128xi32>
    %31 = arith.extui %30 : vector<8x128xi1> to vector<8x128xi32>
    %32 = arith.addi %26, %31 : vector<8x128xi32>
    %33 = vector.extract_strided_slice %0 {offsets = [0, 5], sizes = [8, 1], strides = [1, 1]} : vector<8x16xi32> to vector<8x1xi32>
    %34 = vector.broadcast %33 : vector<8x1xi32> to vector<8x128xi32>
    %35 = vector.broadcast %1 : vector<1x128xi32> to vector<8x128xi32>
    %36 = arith.cmpi eq, %34, %35 : vector<8x128xi32>
    %37 = arith.extui %36 : vector<8x128xi1> to vector<8x128xi32>
    %38 = arith.addi %32, %37 : vector<8x128xi32>
    %39 = vector.extract_strided_slice %0 {offsets = [0, 6], sizes = [8, 1], strides = [1, 1]} : vector<8x16xi32> to vector<8x1xi32>
    %40 = vector.broadcast %39 : vector<8x1xi32> to vector<8x128xi32>
    %41 = vector.broadcast %1 : vector<1x128xi32> to vector<8x128xi32>
    %42 = arith.cmpi eq, %40, %41 : vector<8x128xi32>
    %43 = arith.extui %42 : vector<8x128xi1> to vector<8x128xi32>
    %44 = arith.addi %38, %43 : vector<8x128xi32>
    %45 = vector.extract_strided_slice %0 {offsets = [0, 7], sizes = [8, 1], strides = [1, 1]} : vector<8x16xi32> to vector<8x1xi32>
    %46 = vector.broadcast %45 : vector<8x1xi32> to vector<8x128xi32>
    %47 = vector.broadcast %1 : vector<1x128xi32> to vector<8x128xi32>
    %48 = arith.cmpi eq, %46, %47 : vector<8x128xi32>
    %49 = arith.extui %48 : vector<8x128xi1> to vector<8x128xi32>
    %50 = arith.addi %44, %49 : vector<8x128xi32>
    %51 = vector.extract_strided_slice %0 {offsets = [0, 8], sizes = [8, 1], strides = [1, 1]} : vector<8x16xi32> to vector<8x1xi32>
    %52 = vector.broadcast %51 : vector<8x1xi32> to vector<8x128xi32>
    %53 = vector.broadcast %1 : vector<1x128xi32> to vector<8x128xi32>
    %54 = arith.cmpi eq, %52, %53 : vector<8x128xi32>
    %55 = arith.extui %54 : vector<8x128xi1> to vector<8x128xi32>
    %56 = arith.addi %50, %55 : vector<8x128xi32>
    %57 = vector.extract_strided_slice %0 {offsets = [0, 9], sizes = [8, 1], strides = [1, 1]} : vector<8x16xi32> to vector<8x1xi32>
    %58 = vector.broadcast %57 : vector<8x1xi32> to vector<8x128xi32>
    %59 = vector.broadcast %1 : vector<1x128xi32> to vector<8x128xi32>
    %60 = arith.cmpi eq, %58, %59 : vector<8x128xi32>
    %61 = arith.extui %60 : vector<8x128xi1> to vector<8x128xi32>
    %62 = arith.addi %56, %61 : vector<8x128xi32>
    %63 = vector.extract_strided_slice %0 {offsets = [0, 10], sizes = [8, 1], strides = [1, 1]} : vector<8x16xi32> to vector<8x1xi32>
    %64 = vector.broadcast %63 : vector<8x1xi32> to vector<8x128xi32>
    %65 = vector.broadcast %1 : vector<1x128xi32> to vector<8x128xi32>
    %66 = arith.cmpi eq, %64, %65 : vector<8x128xi32>
    %67 = arith.extui %66 : vector<8x128xi1> to vector<8x128xi32>
    %68 = arith.addi %62, %67 : vector<8x128xi32>
    %69 = vector.extract_strided_slice %0 {offsets = [0, 11], sizes = [8, 1], strides = [1, 1]} : vector<8x16xi32> to vector<8x1xi32>
    %70 = vector.broadcast %69 : vector<8x1xi32> to vector<8x128xi32>
    %71 = vector.broadcast %1 : vector<1x128xi32> to vector<8x128xi32>
    %72 = arith.cmpi eq, %70, %71 : vector<8x128xi32>
    %73 = arith.extui %72 : vector<8x128xi1> to vector<8x128xi32>
    %74 = arith.addi %68, %73 : vector<8x128xi32>
    %75 = vector.extract_strided_slice %0 {offsets = [0, 12], sizes = [8, 1], strides = [1, 1]} : vector<8x16xi32> to vector<8x1xi32>
    %76 = vector.broadcast %75 : vector<8x1xi32> to vector<8x128xi32>
    %77 = vector.broadcast %1 : vector<1x128xi32> to vector<8x128xi32>
    %78 = arith.cmpi eq, %76, %77 : vector<8x128xi32>
    %79 = arith.extui %78 : vector<8x128xi1> to vector<8x128xi32>
    %80 = arith.addi %74, %79 : vector<8x128xi32>
    %81 = vector.extract_strided_slice %0 {offsets = [0, 13], sizes = [8, 1], strides = [1, 1]} : vector<8x16xi32> to vector<8x1xi32>
    %82 = vector.broadcast %81 : vector<8x1xi32> to vector<8x128xi32>
    %83 = vector.broadcast %1 : vector<1x128xi32> to vector<8x128xi32>
    %84 = arith.cmpi eq, %82, %83 : vector<8x128xi32>
    %85 = arith.extui %84 : vector<8x128xi1> to vector<8x128xi32>
    %86 = arith.addi %80, %85 : vector<8x128xi32>
    %87 = vector.extract_strided_slice %0 {offsets = [0, 14], sizes = [8, 1], strides = [1, 1]} : vector<8x16xi32> to vector<8x1xi32>
    %88 = vector.broadcast %87 : vector<8x1xi32> to vector<8x128xi32>
    %89 = vector.broadcast %1 : vector<1x128xi32> to vector<8x128xi32>
    %90 = arith.cmpi eq, %88, %89 : vector<8x128xi32>
    %91 = arith.extui %90 : vector<8x128xi1> to vector<8x128xi32>
    %92 = arith.addi %86, %91 : vector<8x128xi32>
    %93 = vector.extract_strided_slice %0 {offsets = [0, 15], sizes = [8, 1], strides = [1, 1]} : vector<8x16xi32> to vector<8x1xi32>
    %94 = vector.broadcast %93 : vector<8x1xi32> to vector<8x128xi32>
    %95 = vector.broadcast %1 : vector<1x128xi32> to vector<8x128xi32>
    %96 = arith.cmpi eq, %94, %95 : vector<8x128xi32>
    %97 = arith.extui %96 : vector<8x128xi1> to vector<8x128xi32>
    %98 = arith.addi %92, %97 : vector<8x128xi32>
    %99 = arith.sitofp %98 : vector<8x128xi32> to vector<8x128xbf16>
    %c0_i32_1 = arith.constant 0 : i32
    %100 = vector.broadcast %c0_i32_1 : i32 to vector<8x16xi32>
    %101 = arith.cmpi sgt, %0, %100 : vector<8x16xi32>
    %102 = arith.extui %101 : vector<8x16xi1> to vector<8x16xi32>
    %103 = arith.sitofp %102 : vector<8x16xi32> to vector<8x16xf32>
    %cst = arith.constant dense<0.000000e+00> : vector<8xf32>
    %104 = vector.multi_reduction <add>, %103, %cst [1] : vector<8x16xf32> to vector<8xf32>
    %105 = vector.shape_cast %104 : vector<8xf32> to vector<8x1xf32>
    %106 = tpu.reciprocal %105 {approx = true} : vector<8x1xf32> -> vector<8x1xf32>
    %107 = math.log %105 : vector<8x1xf32>
    %c0_2 = arith.constant 0 : index
    %c0_3 = arith.constant 0 : index
    %108 = vector.load %arg3[%c0_2, %c0_3] : memref<128x128xbf16, #tpu.memory_space<vmem>>, vector<128x128xbf16>
    %cst_4 = arith.constant dense<0.000000e+00> : vector<8x128xf32>
    %109 = tpu.matmul %99, %108, %cst_4 {dimension_numbers = #tpu.dot_dimension_numbers<[1], [0], [0], [1], [0, 0, 1, 1], [], []>} : vector<8x128xbf16>, vector<128x128xbf16>, vector<8x128xf32> -> vector<8x128xf32>
    %110 = vector.broadcast %106 : vector<8x1xf32> to vector<8x128xf32>
    %111 = arith.mulf %109, %110 : vector<8x128xf32>
    %c0_5 = arith.constant 0 : index
    %c0_6 = arith.constant 0 : index
    %112 = vector.load %arg4[%c0_5, %c0_6] : memref<1x128xf32, #tpu.memory_space<vmem>>, vector<1x128xf32>
    %113 = vector.broadcast %112 : vector<1x128xf32> to vector<8x128xf32>
    %114 = arith.addf %111, %113 : vector<8x128xf32>
    %115 = arith.truncf %114 : vector<8x128xf32> to vector<8x128xbf16>
    %c0_7 = arith.constant 0 : index
    %c0_8 = arith.constant 0 : index
    %116 = vector.load %arg5[%c0_7, %c0_8] : memref<128x128xbf16, #tpu.memory_space<vmem>>, vector<128x128xbf16>
    %cst_9 = arith.constant dense<0.000000e+00> : vector<8x128xf32>
    %117 = tpu.matmul %115, %116, %cst_9 {dimension_numbers = #tpu.dot_dimension_numbers<[1], [0], [0], [1], [0, 0, 1, 1], [], []>} : vector<8x128xbf16>, vector<128x128xbf16>, vector<8x128xf32> -> vector<8x128xf32>
    %c0_10 = arith.constant 0 : index
    %c0_11 = arith.constant 0 : index
    %118 = vector.load %arg6[%c0_10, %c0_11] : memref<1x128xf32, #tpu.memory_space<vmem>>, vector<1x128xf32>
    %119 = vector.broadcast %107 : vector<8x1xf32> to vector<8x128xf32>
    %120 = vector.broadcast %118 : vector<1x128xf32> to vector<8x128xf32>
    %121 = arith.mulf %119, %120 : vector<8x128xf32>
    %122 = arith.addf %117, %121 : vector<8x128xf32>
    %c0_12 = arith.constant 0 : index
    %c0_13 = arith.constant 0 : index
    %123 = vector.load %arg2[%c0_12, %c0_13] : memref<8x5xf32, #tpu.memory_space<vmem>>, vector<8x5xf32>
    %c0_14 = arith.constant 0 : index
    %c0_15 = arith.constant 0 : index
    %124 = vector.load %arg7[%c0_14, %c0_15] : memref<5x128xf32, #tpu.memory_space<vmem>>, vector<5x128xf32>
    %125 = vector.extract_strided_slice %123 {offsets = [0, 0], sizes = [8, 1], strides = [1, 1]} : vector<8x5xf32> to vector<8x1xf32>
    %126 = vector.extract_strided_slice %124 {offsets = [0, 0], sizes = [1, 128], strides = [1, 1]} : vector<5x128xf32> to vector<1x128xf32>
    %127 = vector.broadcast %125 : vector<8x1xf32> to vector<8x128xf32>
    %128 = vector.broadcast %126 : vector<1x128xf32> to vector<8x128xf32>
    %129 = arith.mulf %127, %128 : vector<8x128xf32>
    %130 = arith.addf %122, %129 : vector<8x128xf32>
    %131 = vector.extract_strided_slice %123 {offsets = [0, 1], sizes = [8, 1], strides = [1, 1]} : vector<8x5xf32> to vector<8x1xf32>
    %132 = vector.extract_strided_slice %124 {offsets = [1, 0], sizes = [1, 128], strides = [1, 1]} : vector<5x128xf32> to vector<1x128xf32>
    %133 = vector.broadcast %131 : vector<8x1xf32> to vector<8x128xf32>
    %134 = vector.broadcast %132 : vector<1x128xf32> to vector<8x128xf32>
    %135 = arith.mulf %133, %134 : vector<8x128xf32>
    %136 = arith.addf %130, %135 : vector<8x128xf32>
    %137 = vector.extract_strided_slice %123 {offsets = [0, 2], sizes = [8, 1], strides = [1, 1]} : vector<8x5xf32> to vector<8x1xf32>
    %138 = vector.extract_strided_slice %124 {offsets = [2, 0], sizes = [1, 128], strides = [1, 1]} : vector<5x128xf32> to vector<1x128xf32>
    %139 = vector.broadcast %137 : vector<8x1xf32> to vector<8x128xf32>
    %140 = vector.broadcast %138 : vector<1x128xf32> to vector<8x128xf32>
    %141 = arith.mulf %139, %140 : vector<8x128xf32>
    %142 = arith.addf %136, %141 : vector<8x128xf32>
    %143 = vector.extract_strided_slice %123 {offsets = [0, 3], sizes = [8, 1], strides = [1, 1]} : vector<8x5xf32> to vector<8x1xf32>
    %144 = vector.extract_strided_slice %124 {offsets = [3, 0], sizes = [1, 128], strides = [1, 1]} : vector<5x128xf32> to vector<1x128xf32>
    %145 = vector.broadcast %143 : vector<8x1xf32> to vector<8x128xf32>
    %146 = vector.broadcast %144 : vector<1x128xf32> to vector<8x128xf32>
    %147 = arith.mulf %145, %146 : vector<8x128xf32>
    %148 = arith.addf %142, %147 : vector<8x128xf32>
    %149 = vector.extract_strided_slice %123 {offsets = [0, 4], sizes = [8, 1], strides = [1, 1]} : vector<8x5xf32> to vector<8x1xf32>
    %150 = vector.extract_strided_slice %124 {offsets = [4, 0], sizes = [1, 128], strides = [1, 1]} : vector<5x128xf32> to vector<1x128xf32>
    %151 = vector.broadcast %149 : vector<8x1xf32> to vector<8x128xf32>
    %152 = vector.broadcast %150 : vector<1x128xf32> to vector<8x128xf32>
    %153 = arith.mulf %151, %152 : vector<8x128xf32>
    %154 = arith.addf %148, %153 : vector<8x128xf32>
    %c0_16 = arith.constant 0 : index
    %c0_17 = arith.constant 0 : index
    %155 = vector.load %arg8[%c0_16, %c0_17] : memref<1x128xf32, #tpu.memory_space<vmem>>, vector<1x128xf32>
    %156 = vector.broadcast %155 : vector<1x128xf32> to vector<8x128xf32>
    %157 = arith.addf %154, %156 : vector<8x128xf32>
    %cst_18 = arith.constant 0.000000e+00 : f32
    %158 = vector.broadcast %cst_18 : f32 to vector<8x128xf32>
    %159 = arith.maximumf %157, %158 : vector<8x128xf32>
    %160 = arith.truncf %159 : vector<8x128xf32> to vector<8x128xbf16>
    %c0_19 = arith.constant 0 : index
    %c0_20 = arith.constant 0 : index
    %c0_21 = arith.constant 0 : index
    %161 = vector.load %arg9[%c0_19, %c0_20, %c0_21] : memref<1x128x128xbf16, #tpu.memory_space<vmem>>, vector<1x128x128xbf16>
    %162 = vector.shape_cast %161 : vector<1x128x128xbf16> to vector<128x128xbf16>
    %cst_22 = arith.constant dense<0.000000e+00> : vector<8x128xf32>
    %163 = tpu.matmul %160, %162, %cst_22 {dimension_numbers = #tpu.dot_dimension_numbers<[1], [0], [0], [1], [0, 0, 1, 1], [], []>} : vector<8x128xbf16>, vector<128x128xbf16>, vector<8x128xf32> -> vector<8x128xf32>
    %c0_23 = arith.constant 0 : index
    %c0_24 = arith.constant 0 : index
    %164 = vector.load %arg10[%c0_23, %c0_24] : memref<1x128xf32, #tpu.memory_space<vmem>>, vector<1x128xf32>
    %165 = vector.broadcast %164 : vector<1x128xf32> to vector<8x128xf32>
    %166 = arith.addf %163, %165 : vector<8x128xf32>
    %cst_25 = arith.constant 0.000000e+00 : f32
    %167 = vector.broadcast %cst_25 : f32 to vector<8x128xf32>
    %168 = arith.maximumf %166, %167 : vector<8x128xf32>
    %169 = arith.addf %168, %114 : vector<8x128xf32>
    %170 = arith.truncf %169 : vector<8x128xf32> to vector<8x128xbf16>
    %c0_26 = arith.constant 0 : index
    %c0_27 = arith.constant 0 : index
    %171 = vector.load %arg11[%c0_26, %c0_27] : memref<128x256xbf16, #tpu.memory_space<vmem>>, vector<128x256xbf16>
    %cst_28 = arith.constant dense<0.000000e+00> : vector<8x256xf32>
    %172 = tpu.matmul %170, %171, %cst_28 {dimension_numbers = #tpu.dot_dimension_numbers<[1], [0], [0], [1], [0, 0, 1, 1], [], []>} : vector<8x128xbf16>, vector<128x256xbf16>, vector<8x256xf32> -> vector<8x256xf32>
    %c0_29 = arith.constant 0 : index
    %c0_30 = arith.constant 0 : index
    %173 = vector.load %arg12[%c0_29, %c0_30] : memref<1x256xf32, #tpu.memory_space<vmem>>, vector<1x256xf32>
    %174 = vector.broadcast %173 : vector<1x256xf32> to vector<8x256xf32>
    %175 = arith.addf %172, %174 : vector<8x256xf32>
    %176 = vector.extract_strided_slice %175 {offsets = [0, 0], sizes = [8, 128], strides = [1, 1]} : vector<8x256xf32> to vector<8x128xf32>
    %c0_31 = arith.constant 0 : index
    %c0_32 = arith.constant 0 : index
    %177 = vector.load %arg13[%c0_31, %c0_32] : memref<8x256xf32, #tpu.memory_space<vmem>>, vector<8x128xf32>
    tpu.vector_store %arg13[%c0_31, %c0_32], %176 {strides = array<i32>} : memref<8x256xf32, #tpu.memory_space<vmem>>, vector<8x128xf32>,
    %178 = vector.extract_strided_slice %175 {offsets = [0, 128], sizes = [8, 128], strides = [1, 1]} : vector<8x256xf32> to vector<8x128xf32>
    %cst_33 = arith.constant 0.000000e+00 : f32
    %179 = vector.broadcast %cst_33 : f32 to vector<8x128xf32>
    %180 = arith.maximumf %178, %179 : vector<8x128xf32>
    %181 = math.absf %178 : vector<8x128xf32>
    %cst_34 = arith.constant 0.000000e+00 : f32
    %182 = vector.broadcast %cst_34 : f32 to vector<8x128xf32>
    %183 = arith.subf %182, %181 : vector<8x128xf32>
    %184 = math.exp %183 : vector<8x128xf32>
    %cst_35 = arith.constant 1.000000e+00 : f32
    %185 = vector.broadcast %cst_35 : f32 to vector<8x128xf32>
    %186 = arith.addf %185, %184 : vector<8x128xf32>
    %187 = math.log %186 : vector<8x128xf32>
    %188 = arith.addf %180, %187 : vector<8x128xf32>
    %c0_36 = arith.constant 0 : index
    %c128 = arith.constant 128 : index
    %189 = vector.load %arg13[%c0_36, %c128] : memref<8x256xf32, #tpu.memory_space<vmem>>, vector<8x128xf32>
    tpu.vector_store %arg13[%c0_36, %c128], %188 {strides = array<i32>} : memref<8x256xf32, #tpu.memory_space<vmem>>, vector<8x128xf32>,
    return
  }
  func.func @transform_0(%arg0: i32) -> (i32, i32) {
    %c0_i32 = arith.constant 0 : i32
    %c0_i32_0 = arith.constant 0 : i32
    return %arg0, %c0_i32 : i32, i32
  }
  func.func @transform_1(%arg0: i32) -> (i32, i32) {
    %c0_i32 = arith.constant 0 : i32
    %c0_i32_0 = arith.constant 0 : i32
    return %arg0, %c0_i32 : i32, i32
  }
  func.func @transform_2(%arg0: i32) -> (i32, i32) {
    %c0_i32 = arith.constant 0 : i32
    %c0_i32_0 = arith.constant 0 : i32
    %c0_i32_1 = arith.constant 0 : i32
    return %c0_i32, %c0_i32_0 : i32, i32
  }
  func.func @transform_3(%arg0: i32) -> (i32, i32) {
    %c0_i32 = arith.constant 0 : i32
    %c0_i32_0 = arith.constant 0 : i32
    %c0_i32_1 = arith.constant 0 : i32
    return %c0_i32, %c0_i32_0 : i32, i32
  }
  func.func @transform_4(%arg0: i32) -> (i32, i32) {
    %c0_i32 = arith.constant 0 : i32
    %c0_i32_0 = arith.constant 0 : i32
    %c0_i32_1 = arith.constant 0 : i32
    return %c0_i32, %c0_i32_0 : i32, i32
  }
  func.func @transform_5(%arg0: i32) -> (i32, i32) {
    %c0_i32 = arith.constant 0 : i32
    %c0_i32_0 = arith.constant 0 : i32
    %c0_i32_1 = arith.constant 0 : i32
    return %c0_i32, %c0_i32_0 : i32, i32
  }
  func.func @transform_6(%arg0: i32) -> (i32, i32) {
    %c0_i32 = arith.constant 0 : i32
    %c0_i32_0 = arith.constant 0 : i32
    %c0_i32_1 = arith.constant 0 : i32
    return %c0_i32, %c0_i32_0 : i32, i32
  }
  func.func @transform_7(%arg0: i32) -> (i32, i32) {
    %c0_i32 = arith.constant 0 : i32
    %c0_i32_0 = arith.constant 0 : i32
    %c0_i32_1 = arith.constant 0 : i32
    return %c0_i32, %c0_i32_0 : i32, i32
  }
  func.func @transform_8(%arg0: i32) -> (i32, i32, i32) {
    %c0_i32 = arith.constant 0 : i32
    %c0_i32_0 = arith.constant 0 : i32
    %c0_i32_1 = arith.constant 0 : i32
    %c0_i32_2 = arith.constant 0 : i32
    return %c0_i32, %c0_i32_0, %c0_i32_1 : i32, i32, i32
  }
  func.func @transform_9(%arg0: i32) -> (i32, i32) {
    %c0_i32 = arith.constant 0 : i32
    %c0_i32_0 = arith.constant 0 : i32
    %c0_i32_1 = arith.constant 0 : i32
    return %c0_i32, %c0_i32_0 : i32, i32
  }
  func.func @transform_10(%arg0: i32) -> (i32, i32) {
    %c0_i32 = arith.constant 0 : i32
    %c0_i32_0 = arith.constant 0 : i32
    %c0_i32_1 = arith.constant 0 : i32
    return %c0_i32, %c0_i32_0 : i32, i32
  }
  func.func @transform_11(%arg0: i32) -> (i32, i32) {
    %c0_i32 = arith.constant 0 : i32
    %c0_i32_0 = arith.constant 0 : i32
    %c0_i32_1 = arith.constant 0 : i32
    return %c0_i32, %c0_i32_0 : i32, i32
  }
  func.func @transform_12(%arg0: i32) -> (i32, i32) {
    %c0_i32 = arith.constant 0 : i32
    %c0_i32_0 = arith.constant 0 : i32
    return %arg0, %c0_i32 : i32, i32
  }
}

</mosaic_0001>

<llo_original>
// kernel: tpu_custom_call.1
$region0: #{tpu_custom_call.1}
  #allocation0 [shape = 'u32[]', space=smem, size = 0x4, offset = 0x4, fixed_abs, tag = 'smem constant byte address 0x4 - core index']
  #allocation1 [shape = 'u32[72,128]{1,0:T(1,128)}', space=vmem, size = 0x9000, scoped, tag = 'internal scratch']
  %s0 = inlined_call_operand.hbm [shape: s32[8,16], index: 0, kind: input, shape index: {}]
  %s1 = inlined_call_operand.hbm [shape: f32[8,5], index: 1, kind: input, shape index: {}]
  %s2 = inlined_call_operand.hbm [shape: bf16[128,128], index: 2, kind: input, shape index: {}]
  %s3 = inlined_call_operand.vmem [shape: f32[1,128], index: 3, kind: input, shape index: {}]
  %s4 = inlined_call_operand.hbm [shape: bf16[128,128], index: 4, kind: input, shape index: {}]
  %s5 = inlined_call_operand.vmem [shape: f32[1,128], index: 5, kind: input, shape index: {}]
  %s6 = inlined_call_operand.hbm [shape: f32[5,128], index: 6, kind: input, shape index: {}]
  %s7 = inlined_call_operand.vmem [shape: f32[1,128], index: 7, kind: input, shape index: {}]
  %s8 = inlined_call_operand.hbm [shape: bf16[1,128,128], index: 8, kind: input, shape index: {}]
  %s9 = inlined_call_operand.vmem [shape: f32[1,128], index: 9, kind: input, shape index: {}]
  %s10 = inlined_call_operand.hbm [shape: bf16[128,256], index: 10, kind: input, shape index: {}]
  %s11 = inlined_call_operand.vmem [shape: f32[1,256], index: 11, kind: input, shape index: {}]
  %s12 = inlined_call_operand.hbm [shape: f32[8,256], index: 12, kind: output, shape index: {}]
  %s13 = sld [smem:[#allocation0]]
  $region86: #{tpu_custom_call.1} parent=0
    _
  %s15 = ssub.s32 1, %s13
  %s16 = scalar_select 0, %s15, %s13
  $region1: #{tpu_custom_call.1} parent=0
    #allocation2 [shape = 'u8[4096]{0}', space=vmem, size = 0x1000, scoped, tag = 'input window, operand 0, single buffered']
    #allocation3 [shape = 's32[1]{0}', space=sflag, size = 0x4, scoped, tag = 'scoped memory for tpu_custom_call.1']
    #allocation4 [shape = 's32[1]{0}', space=sflag, size = 0x4, scoped, tag = 'scoped memory for tpu_custom_call.1']
    #allocation5 [shape = 'u8[4096]{0}', space=vmem, size = 0x1000, scoped, tag = 'input window, operand 1, single buffered']
    #allocation6 [shape = 's32[1]{0}', space=sflag, size = 0x4, scoped, tag = 'scoped memory for tpu_custom_call.1']
    #allocation7 [shape = 'u8[32768]{0}', space=vmem, size = 0x8000, scoped, tag = 'input window, operand 2, single buffered']
    #allocation8 [shape = 'u8[32768]{0}', space=vmem, size = 0x8000, scoped, tag = 'input window, operand 4, single buffered']
    #allocation9 [shape = 's32[1]{0}', space=sflag, size = 0x4, scoped, tag = 'scoped memory for tpu_custom_call.1']
    #allocation10 [shape = 'u8[4096]{0}', space=vmem, size = 0x1000, scoped, tag = 'input window, operand 6, single buffered']
    #allocation11 [shape = 'u8[32768]{0}', space=vmem, size = 0x8000, scoped, tag = 'input window, operand 8, single buffered']
    #allocation12 [shape = 's32[1]{0}', space=sflag, size = 0x4, scoped, tag = 'scoped memory for tpu_custom_call.1']
    #allocation13 [shape = 'u8[65536]{0}', space=vmem, size = 0x10000, scoped, tag = 'input window, operand 10, single buffered']
    #allocation14 [shape = 'u8[8192]{0}', space=vmem, size = 0x2000, scoped, tag = 'output window, operand 0, single buffered']
    %17 = vsyncpa [#allocation3], 0
    %18 = vsyncpa [#allocation6], 0
    %19 = vsyncpa [#allocation9], 0
    %20 = vsyncpa [#allocation12], 0
    %21 = vsyncpa [#allocation4], 0
    // Predicated region
    $region2: #{tpu_custom_call.1} parent=1 // pred_check
      _
    $region3: #{tpu_custom_call.1} parent=1 // pred_check_branch
      %23 = sbr.rel (0) target = $region5
    $region4: #{tpu_custom_call.1} parent=1 // pred_region
      %25 = vsyncadd [#allocation3], 0
      %s27 = sshll.u32 %s0, 4
      %s28 = int_to_ptr.hbm [resolvable:$true] %s27
      %s29 = sshll.u32 [#allocation2], 4
      %s30 = int_to_ptr.vmem [resolvable:$true] %s29
      %32 = dma.hbm_to_vmem [thread:$0]  %s28, 128, %s30, [#allocation3]
    $region5: #{tpu_custom_call.1} parent=1 // pred_fallthru
      _
    // Predicated region
    $region6: #{tpu_custom_call.1} parent=1 // pred_check
      _
    $region7: #{tpu_custom_call.1} parent=1 // pred_check_branch
      %34 = sbr.rel (0) target = $region9
    $region8: #{tpu_custom_call.1} parent=1 // pred_region
      %36 = vsyncadd [#allocation6], 0
      %s38 = sshll.u32 %s1, 4
      %s39 = int_to_ptr.hbm [resolvable:$true] %s38
      %s40 = sshll.u32 [#allocation5], 4
      %s41 = int_to_ptr.vmem [resolvable:$true] %s40
      %43 = dma.hbm_to_vmem [thread:$0]  %s39, 128, %s41, [#allocation6]
    $region9: #{tpu_custom_call.1} parent=1 // pred_fallthru
      _
    // Predicated region
    $region10: #{tpu_custom_call.1} parent=1 // pred_check
      _
    $region11: #{tpu_custom_call.1} parent=1 // pred_check_branch
      %45 = sbr.rel (0) target = $region13
    $region12: #{tpu_custom_call.1} parent=1 // pred_region
      %47 = vsyncadd [#allocation6], 0
      %s48 = sshll.u32 %s2, 4
      %s49 = int_to_ptr.hbm [resolvable:$true] %s48
      %s50 = sshll.u32 [#allocation7], 4
      %s51 = int_to_ptr.vmem [resolvable:$true] %s50
      %56 = dma.hbm_to_vmem [thread:$0]  %s49, 1024, %s51, [#allocation6], 64, 64, 4
    $region13: #{tpu_custom_call.1} parent=1 // pred_fallthru
      _
    // Predicated region
    $region14: #{tpu_custom_call.1} parent=1 // pred_check
      _
    $region15: #{tpu_custom_call.1} parent=1 // pred_check_branch
      %58 = sbr.rel (0) target = $region17
    $region16: #{tpu_custom_call.1} parent=1 // pred_region
      _
    $region17: #{tpu_custom_call.1} parent=1 // pred_fallthru
      _
    // Predicated region
    $region18: #{tpu_custom_call.1} parent=1 // pred_check
      _
    $region19: #{tpu_custom_call.1} parent=1 // pred_check_branch
      %60 = sbr.rel (0) target = $region21
    $region20: #{tpu_custom_call.1} parent=1 // pred_region
      %62 = vsyncadd [#allocation9], 0
      %s63 = sshll.u32 %s4, 4
      %s64 = int_to_ptr.hbm [resolvable:$true] %s63
      %s65 = sshll.u32 [#allocation8], 4
      %s66 = int_to_ptr.vmem [resolvable:$true] %s65
      %71 = dma.hbm_to_vmem [thread:$0]  %s64, 1024, %s66, [#allocation9], 64, 64, 4
    $region21: #{tpu_custom_call.1} parent=1 // pred_fallthru
      _
    // Predicated region
    $region22: #{tpu_custom_call.1} parent=1 // pred_check
      _
    $region23: #{tpu_custom_call.1} parent=1 // pred_check_branch
      %73 = sbr.rel (0) target = $region25
    $region24: #{tpu_custom_call.1} parent=1 // pred_region
      _
    $region25: #{tpu_custom_call.1} parent=1 // pred_fallthru
      _
    // Predicated region
    $region26: #{tpu_custom_call.1} parent=1 // pred_check
      _
    $region27: #{tpu_custom_call.1} parent=1 // pred_check_branch
      %75 = sbr.rel (0) target = $region29
    $region28: #{tpu_custom_call.1} parent=1 // pred_region
      %77 = vsyncadd [#allocation9], 0
      %s79 = sshll.u32 %s6, 4
      %s80 = int_to_ptr.hbm [resolvable:$true] %s79
      %s81 = sshll.u32 [#allocation10], 4
      %s82 = int_to_ptr.vmem [resolvable:$true] %s81
      %84 = dma.hbm_to_vmem [thread:$0]  %s80, 128, %s82, [#allocation9]
    $region29: #{tpu_custom_call.1} parent=1 // pred_fallthru
      _
    // Predicated region
    $region30: #{tpu_custom_call.1} parent=1 // pred_check
      _
    $region31: #{tpu_custom_call.1} parent=1 // pred_check_branch
      %86 = sbr.rel (0) target = $region33
    $region32: #{tpu_custom_call.1} parent=1 // pred_region
      _
    $region33: #{tpu_custom_call.1} parent=1 // pred_fallthru
      _
    // Predicated region
    $region34: #{tpu_custom_call.1} parent=1 // pred_check
      _
    $region35: #{tpu_custom_call.1} parent=1 // pred_check_branch
      %88 = sbr.rel (0) target = $region37
    $region36: #{tpu_custom_call.1} parent=1 // pred_region
      %90 = vsyncadd [#allocation12], 0
      %s91 = sshll.u32 %s8, 4
      %s92 = int_to_ptr.hbm [resolvable:$true] %s91
      %s93 = sshll.u32 [#allocation11], 4
      %s94 = int_to_ptr.vmem [resolvable:$true] %s93
      %99 = dma.hbm_to_vmem [thread:$0]  %s92, 1024, %s94, [#allocation12], 64, 64, 4
    $region37: #{tpu_custom_call.1} parent=1 // pred_fallthru
      _
    // Predicated region
    $region38: #{tpu_custom_call.1} parent=1 // pred_check
      _
    $region39: #{tpu_custom_call.1} parent=1 // pred_check_branch
      %101 = sbr.rel (0) target = $region41
    $region40: #{tpu_custom_call.1} parent=1 // pred_region
      _
    $region41: #{tpu_custom_call.1} parent=1 // pred_fallthru
      _
    // Predicated region
    $region42: #{tpu_custom_call.1} parent=1 // pred_check
      _
    $region43: #{tpu_custom_call.1} parent=1 // pred_check_branch
      %103 = sbr.rel (0) target = $region45
    $region44: #{tpu_custom_call.1} parent=1 // pred_region
      %105 = vsyncadd [#allocation12], 0
      %s106 = sshll.u32 %s10, 4
      %s107 = int_to_ptr.hbm [resolvable:$true] %s106
      %s108 = sshll.u32 [#allocation13], 4
      %s109 = int_to_ptr.vmem [resolvable:$true] %s108
      %114 = dma.hbm_to_vmem [thread:$0]  %s107, 2048, %s109, [#allocation12], 128, 128, 8
    $region45: #{tpu_custom_call.1} parent=1 // pred_fallthru
      _
    // Predicated region
    $region46: #{tpu_custom_call.1} parent=1 // pred_check
      _
    $region47: #{tpu_custom_call.1} parent=1 // pred_check_branch
      %116 = sbr.rel (0) target = $region49
    $region48: #{tpu_custom_call.1} parent=1 // pred_region
      _
    $region49: #{tpu_custom_call.1} parent=1 // pred_fallthru
      _
    // Predicated region
    $region50: #{tpu_custom_call.1} parent=1 // pred_check
      _
    $region51: #{tpu_custom_call.1} parent=1 // pred_check_branch
      %118 = sbr.rel (0) target = $region53
    $region52: #{tpu_custom_call.1} parent=1 // pred_region
      %120 = dma.done [#allocation3], 128
    $region53: #{tpu_custom_call.1} parent=1 // pred_fallthru
      _
    // Predicated region
    $region54: #{tpu_custom_call.1} parent=1 // pred_check
      _
    $region55: #{tpu_custom_call.1} parent=1 // pred_check_branch
      %122 = sbr.rel (0) target = $region57
    $region56: #{tpu_custom_call.1} parent=1 // pred_region
      %124 = dma.done [#allocation6], 128
    $region57: #{tpu_custom_call.1} parent=1 // pred_fallthru
      _
    // Predicated region
    $region58: #{tpu_custom_call.1} parent=1 // pred_check
      _
    $region59: #{tpu_custom_call.1} parent=1 // pred_check_branch
      %126 = sbr.rel (0) target = $region61
    $region60: #{tpu_custom_call.1} parent=1 // pred_region
      %128 = dma.done [#allocation6], 1024
    $region61: #{tpu_custom_call.1} parent=1 // pred_fallthru
      _
    // Predicated region
    $region62: #{tpu_custom_call.1} parent=1 // pred_check
      _
    $region63: #{tpu_custom_call.1} parent=1 // pred_check_branch
      %130 = sbr.rel (0) target = $region65
    $region64: #{tpu_custom_call.1} parent=1 // pred_region
      %132 = dma.done [#allocation9], 1024
    $region65: #{tpu_custom_call.1} parent=1 // pred_fallthru
      _
    // Predicated region
    $region66: #{tpu_custom_call.1} parent=1 // pred_check
      _
    $region67: #{tpu_custom_call.1} parent=1 // pred_check_branch
      %134 = sbr.rel (0) target = $region69
    $region68: #{tpu_custom_call.1} parent=1 // pred_region
      %136 = dma.done [#allocation9], 128
    $region69: #{tpu_custom_call.1} parent=1 // pred_fallthru
      _
    // Predicated region
    $region70: #{tpu_custom_call.1} parent=1 // pred_check
      _
    $region71: #{tpu_custom_call.1} parent=1 // pred_check_branch
      %138 = sbr.rel (0) target = $region73
    $region72: #{tpu_custom_call.1} parent=1 // pred_region
      %140 = dma.done [#allocation12], 1024
    $region73: #{tpu_custom_call.1} parent=1 // pred_fallthru
      _
    // Predicated region
    $region74: #{tpu_custom_call.1} parent=1 // pred_check
      _
    $region75: #{tpu_custom_call.1} parent=1 // pred_check_branch
      %142 = sbr.rel (0) target = $region77
    $region76: #{tpu_custom_call.1} parent=1 // pred_region
      %144 = dma.done [#allocation12], 2048
    $region77: #{tpu_custom_call.1} parent=1 // pred_fallthru
      _
    %v145 = vld [vmem:[#allocation2] sm:$0xff]
    %v146 = vlaneseq
    %v147 = vand.u32 %v146, 127
    %148 = vset.pattern.permute.xlu0 0
    %149 = vperm.xlu0 %148, %v145
    %v150 = vpop.permute.xlu0 %149
    %vm151 = vcmp.eq.s32.totalorder %v150, %v147
    %v152 = vsel %vm151, 1, 0
    %153 = vset.pattern.permute.xlu0 1
    %154 = vperm.xlu0 %153, %v145
    %v155 = vpop.permute.xlu0 %154
    %vm156 = vcmp.eq.s32.totalorder %v155, %v147
    %v157 = vsel %vm156, 1, 0
    %v158 = vadd.s32 %v152, %v157
    %159 = vset.pattern.permute.xlu0 2
    %160 = vperm.xlu0 %159, %v145
    %v161 = vpop.permute.xlu0 %160
    %vm162 = vcmp.eq.s32.totalorder %v161, %v147
    %v163 = vsel %vm162, 1, 0
    %v164 = vadd.s32 %v158, %v163
    %165 = vset.pattern.permute.xlu0 3
    %166 = vperm.xlu0 %165, %v145
    %v167 = vpop.permute.xlu0 %166
    %vm168 = vcmp.eq.s32.totalorder %v167, %v147
    %v169 = vsel %vm168, 1, 0
    %v170 = vadd.s32 %v164, %v169
    %171 = vset.pattern.permute.xlu0 4
    %172 = vperm.xlu0 %171, %v145
    %v173 = vpop.permute.xlu0 %172
    %vm174 = vcmp.eq.s32.totalorder %v173, %v147
    %v175 = vsel %vm174, 1, 0
    %v176 = vadd.s32 %v170, %v175
    %177 = vset.pattern.permute.xlu0 5
    %178 = vperm.xlu0 %177, %v145
    %v179 = vpop.permute.xlu0 %178
    %vm180 = vcmp.eq.s32.totalorder %v179, %v147
    %v181 = vsel %vm180, 1, 0
    %v182 = vadd.s32 %v176, %v181
    %183 = vset.pattern.permute.xlu0 6
    %184 = vperm.xlu0 %183, %v145
    %v185 = vpop.permute.xlu0 %184
    %vm186 = vcmp.eq.s32.totalorder %v185, %v147
    %v187 = vsel %vm186, 1, 0
    %v188 = vadd.s32 %v182, %v187
    %189 = vset.pattern.permute.xlu0 7
    %190 = vperm.xlu0 %189, %v145
    %v191 = vpop.permute.xlu0 %190
    %vm192 = vcmp.eq.s32.totalorder %v191, %v147
    %v193 = vsel %vm192, 1, 0
    %v194 = vadd.s32 %v188, %v193
    %195 = vset.pattern.permute.xlu0 8
    %196 = vperm.xlu0 %195, %v145
    %v197 = vpop.permute.xlu0 %196
    %vm198 = vcmp.eq.s32.totalorder %v197, %v147
    %v199 = vsel %vm198, 1, 0
    %v200 = vadd.s32 %v194, %v199
    %201 = vset.pattern.permute.xlu0 9
    %202 = vperm.xlu0 %201, %v145
    %v203 = vpop.permute.xlu0 %202
    %vm204 = vcmp.eq.s32.totalorder %v203, %v147
    %v205 = vsel %vm204, 1, 0
    %v206 = vadd.s32 %v200, %v205
    %207 = vset.pattern.permute.xlu0 10
    %208 = vperm.xlu0 %207, %v145
    %v209 = vpop.permute.xlu0 %208
    %vm210 = vcmp.eq.s32.totalorder %v209, %v147
    %v211 = vsel %vm210, 1, 0
    %v212 = vadd.s32 %v206, %v211
    %213 = vset.pattern.permute.xlu0 11
    %214 = vperm.xlu0 %213, %v145
    %v215 = vpop.permute.xlu0 %214
    %vm216 = vcmp.eq.s32.totalorder %v215, %v147
    %v217 = vsel %vm216, 1, 0
    %v218 = vadd.s32 %v212, %v217
    %219 = vset.pattern.permute.xlu0 12
    %220 = vperm.xlu0 %219, %v145
    %v221 = vpop.permute.xlu0 %220
    %vm222 = vcmp.eq.s32.totalorder %v221, %v147
    %v223 = vsel %vm222, 1, 0
    %v224 = vadd.s32 %v218, %v223
    %225 = vset.pattern.permute.xlu0 13
    %226 = vperm.xlu0 %225, %v145
    %v227 = vpop.permute.xlu0 %226
    %vm228 = vcmp.eq.s32.totalorder %v227, %v147
    %v229 = vsel %vm228, 1, 0
    %v230 = vadd.s32 %v224, %v229
    %231 = vset.pattern.permute.xlu0 14
    %232 = vperm.xlu0 %231, %v145
    %v233 = vpop.permute.xlu0 %232
    %vm234 = vcmp.eq.s32.totalorder %v233, %v147
    %v235 = vsel %vm234, 1, 0
    %v236 = vadd.s32 %v230, %v235
    %237 = vset.pattern.permute.xlu0 15
    %238 = vperm.xlu0 %237, %v145
    %v239 = vpop.permute.xlu0 %238
    %vm240 = vcmp.eq.s32.totalorder %v239, %v147
    %v241 = vsel %vm240, 1, 0
    %v242 = vadd.s32 %v236, %v241
    %v243 = vcvt.s32.f32 %v242
    %v244 = vpack.c.bf16 %v243, %v243
    %vm245 = vcmp.gt.s32.totalorder %v145, 0
    %v246 = vsel %vm245, 1, 0
    %v247 = vcvt.s32.f32 %v246
    %vm248 = vcmask 130048
    %v249 = vsel %vm248, %v247, 0.0
    %250 = vadd.xlane.f32.xlu0 %v249
    %v251 = vpop.xlane.xlu0 %250
    %v252 = vrcp.pop %v251
    %v253 = vlog2.pop %v251
    %v254 = vmul.f32 %v253, 0.6931472
    %v255 = vld [vmem:[#allocation7] sm:$0xf]
    %v256 = vld [vmem:[#allocation7 + $0x4] sm:$0xf]
    %v257 = vld [vmem:[#allocation7 + $0x8] sm:$0xf]
    %v258 = vld [vmem:[#allocation7 + $0xc] sm:$0xf]
    %v259 = vld [vmem:[#allocation7 + $0x10] sm:$0xf]
    %v260 = vld [vmem:[#allocation7 + $0x14] sm:$0xf]
    %v261 = vld [vmem:[#allocation7 + $0x18] sm:$0xf]
    %v262 = vld [vmem:[#allocation7 + $0x1c] sm:$0xf]
    %v263 = vld [vmem:[#allocation7 + $0x20] sm:$0xf]
    %v264 = vld [vmem:[#allocation7 + $0x24] sm:$0xf]
    %v265 = vld [vmem:[#allocation7 + $0x28] sm:$0xf]
    %v266 = vld [vmem:[#allocation7 + $0x2c] sm:$0xf]
    %v267 = vld [vmem:[#allocation7 + $0x30] sm:$0xf]
    %v268 = vld [vmem:[#allocation7 + $0x34] sm:$0xf]
    %v269 = vld [vmem:[#allocation7 + $0x38] sm:$0xf]
    %v270 = vld [vmem:[#allocation7 + $0x3c] sm:$0xf]
    %v287 = vunpack.c.l.b16 %v255
    %v288 = vunpack.c.l.b16 %v256
    %v289 = vunpack.c.l.b16 %v257
    %v290 = vunpack.c.l.b16 %v258
    %v291 = vunpack.c.l.b16 %v259
    %v292 = vunpack.c.l.b16 %v260
    %v293 = vunpack.c.l.b16 %v261
    %v294 = vunpack.c.l.b16 %v262
    %v295 = vunpack.c.l.b16 %v263
    %v296 = vunpack.c.l.b16 %v264
    %v297 = vunpack.c.l.b16 %v265
    %v298 = vunpack.c.l.b16 %v266
    %v299 = vunpack.c.l.b16 %v267
    %v300 = vunpack.c.l.b16 %v268
    %v301 = vunpack.c.l.b16 %v269
    %v302 = vunpack.c.l.b16 %v270
    %v303 = vpack.c.b16 %v288, %v287
    %v304 = vpack.c.b16 %v290, %v289
    %v305 = vpack.c.b16 %v292, %v291
    %v306 = vpack.c.b16 %v294, %v293
    %v307 = vpack.c.b16 %v296, %v295
    %v308 = vpack.c.b16 %v298, %v297
    %v309 = vpack.c.b16 %v300, %v299
    %v310 = vpack.c.b16 %v302, %v301
    %319 = vmatpush.bf16.msra.mxu0 %v310
    %320 = vmatpush.bf16.msra.mxu0 %v309
    %321 = vmatpush.bf16.msra.mxu0 %v308
    %322 = vmatpush.bf16.msra.mxu0 %v307
    %323 = vmatpush.bf16.msra.mxu0 %v306
    %324 = vmatpush.bf16.msra.mxu0 %v305
    %325 = vmatpush.bf16.msra.mxu0 %v304
    %326 = vmatpush.bf16.msra.mxu0 %v303
    %327 = vmatmul.bf16.gmra.mxu0 %v244
    %v328 = vpop.f32.mrf.mxu0
    %v329 = vadd.f32 0.0, %v328
    %v330 = vpop.f32.mrf.mxu0
    %331 = vdwg.mxu0
    %v332 = vmul.f32 %v329, %v252
    %v333 = vld [vmem:[%s3] sm:$0x1]
    %v335 = vperm.slane %v333, 0
    %v337 = vadd.f32 %v332, %v335
    %v338 = vpack.c.bf16 %v337, %v337
    %v339 = vld [vmem:[#allocation8] sm:$0xf]
    %v340 = vld [vmem:[#allocation8 + $0x4] sm:$0xf]
    %v341 = vld [vmem:[#allocation8 + $0x8] sm:$0xf]
    %v342 = vld [vmem:[#allocation8 + $0xc] sm:$0xf]
    %v343 = vld [vmem:[#allocation8 + $0x10] sm:$0xf]
    %v344 = vld [vmem:[#allocation8 + $0x14] sm:$0xf]
    %v345 = vld [vmem:[#allocation8 + $0x18] sm:$0xf]
    %v346 = vld [vmem:[#allocation8 + $0x1c] sm:$0xf]
    %v347 = vld [vmem:[#allocation8 + $0x20] sm:$0xf]
    %v348 = vld [vmem:[#allocation8 + $0x24] sm:$0xf]
    %v349 = vld [vmem:[#allocation8 + $0x28] sm:$0xf]
    %v350 = vld [vmem:[#allocation8 + $0x2c] sm:$0xf]
    %v351 = vld [vmem:[#allocation8 + $0x30] sm:$0xf]
    %v352 = vld [vmem:[#allocation8 + $0x34] sm:$0xf]
    %v353 = vld [vmem:[#allocation8 + $0x38] sm:$0xf]
    %v354 = vld [vmem:[#allocation8 + $0x3c] sm:$0xf]
    %v355 = vld [vmem:[%s5] sm:$0x1]
    %v357 = vperm.slane %v355, 0
    %v359 = vmul.f32 %v254, %v357
    %v376 = vunpack.c.l.b16 %v339
    %v377 = vunpack.c.l.b16 %v340
    %v378 = vunpack.c.l.b16 %v341
    %v379 = vunpack.c.l.b16 %v342
    %v380 = vunpack.c.l.b16 %v343
    %v381 = vunpack.c.l.b16 %v344
    %v382 = vunpack.c.l.b16 %v345
    %v383 = vunpack.c.l.b16 %v346
    %v384 = vunpack.c.l.b16 %v347
    %v385 = vunpack.c.l.b16 %v348
    %v386 = vunpack.c.l.b16 %v349
    %v387 = vunpack.c.l.b16 %v350
    %v388 = vunpack.c.l.b16 %v351
    %v389 = vunpack.c.l.b16 %v352
    %v390 = vunpack.c.l.b16 %v353
    %v391 = vunpack.c.l.b16 %v354
    %v392 = vpack.c.b16 %v377, %v376
    %v393 = vpack.c.b16 %v379, %v378
    %v394 = vpack.c.b16 %v381, %v380
    %v395 = vpack.c.b16 %v383, %v382
    %v396 = vpack.c.b16 %v385, %v384
    %v397 = vpack.c.b16 %v387, %v386
    %v398 = vpack.c.b16 %v389, %v388
    %v399 = vpack.c.b16 %v391, %v390
    %408 = vmatpush.bf16.msra.mxu0 %v399
    %409 = vmatpush.bf16.msra.mxu0 %v398
    %410 = vmatpush.bf16.msra.mxu0 %v397
    %411 = vmatpush.bf16.msra.mxu0 %v396
    %412 = vmatpush.bf16.msra.mxu0 %v395
    %413 = vmatpush.bf16.msra.mxu0 %v394
    %414 = vmatpush.bf16.msra.mxu0 %v393
    %415 = vmatpush.bf16.msra.mxu0 %v392
    %416 = vmatmul.bf16.gmra.mxu0 %v338
    %v417 = vpop.f32.mrf.mxu0
    %v418 = vadd.f32 %v359, %v417
    %v419 = vpop.f32.mrf.mxu0
    %420 = vdwg.mxu0
    %v421 = vld [vmem:[#allocation5] sm:$0xff]
    %v422 = vld [vmem:[#allocation10] sm:$0x1f]
    %424 = vset.pattern.permute.xlu0 0
    %425 = vperm.xlu0 %424, %v421
    %v426 = vpop.permute.xlu0 %425
    %v428 = vperm.slane %v422, 0
    %v429 = vmul.f32 %v426, %v428
    %v430 = vadd.f32 %v418, %v429
    %431 = vset.pattern.permute.xlu0 1
    %432 = vperm.xlu0 %431, %v421
    %v433 = vpop.permute.xlu0 %432
    %v435 = vperm.slane %v422, 1
    %v436 = vmul.f32 %v433, %v435
    %v437 = vadd.f32 %v430, %v436
    %438 = vset.pattern.permute.xlu0 2
    %439 = vperm.xlu0 %438, %v421
    %v440 = vpop.permute.xlu0 %439
    %v442 = vperm.slane %v422, 2
    %v443 = vmul.f32 %v440, %v442
    %v444 = vadd.f32 %v437, %v443
    %445 = vset.pattern.permute.xlu0 3
    %446 = vperm.xlu0 %445, %v421
    %v447 = vpop.permute.xlu0 %446
    %v449 = vperm.slane %v422, 3
    %v450 = vmul.f32 %v447, %v449
    %v451 = vadd.f32 %v444, %v450
    %452 = vset.pattern.permute.xlu0 4
    %453 = vperm.xlu0 %452, %v421
    %v454 = vpop.permute.xlu0 %453
    %v456 = vperm.slane %v422, 4
    %v457 = vmul.f32 %v454, %v456
    %v458 = vadd.f32 %v451, %v457
    %v459 = vld [vmem:[%s7] sm:$0x1]
    %v461 = vperm.slane %v459, 0
    %v463 = vadd.f32 %v458, %v461
    %v464 = vmax.f32 %v463, 0.0
    %v465 = vpack.c.bf16 %v464, %v464
    %v466 = vld [vmem:[#allocation11] sm:$0xf]
    %v467 = vld [vmem:[#allocation11 + $0x4] sm:$0xf]
    %v468 = vld [vmem:[#allocation11 + $0x8] sm:$0xf]
    %v469 = vld [vmem:[#allocation11 + $0xc] sm:$0xf]
    %v470 = vld [vmem:[#allocation11 + $0x10] sm:$0xf]
    %v471 = vld [vmem:[#allocation11 + $0x14] sm:$0xf]
    %v472 = vld [vmem:[#allocation11 + $0x18] sm:$0xf]
    %v473 = vld [vmem:[#allocation11 + $0x1c] sm:$0xf]
    %v474 = vld [vmem:[#allocation11 + $0x20] sm:$0xf]
    %v475 = vld [vmem:[#allocation11 + $0x24] sm:$0xf]
    %v476 = vld [vmem:[#allocation11 + $0x28] sm:$0xf]
    %v477 = vld [vmem:[#allocation11 + $0x2c] sm:$0xf]
    %v478 = vld [vmem:[#allocation11 + $0x30] sm:$0xf]
    %v479 = vld [vmem:[#allocation11 + $0x34] sm:$0xf]
    %v480 = vld [vmem:[#allocation11 + $0x38] sm:$0xf]
    %v481 = vld [vmem:[#allocation11 + $0x3c] sm:$0xf]
    %v482 = vld [vmem:[%s9] sm:$0x1]
    %v484 = vperm.slane %v482, 0
    %v502 = vunpack.c.l.b16 %v466
    %v503 = vunpack.c.l.b16 %v467
    %v504 = vunpack.c.l.b16 %v468
    %v505 = vunpack.c.l.b16 %v469
    %v506 = vunpack.c.l.b16 %v470
    %v507 = vunpack.c.l.b16 %v471
    %v508 = vunpack.c.l.b16 %v472
    %v509 = vunpack.c.l.b16 %v473
    %v510 = vunpack.c.l.b16 %v474
    %v511 = vunpack.c.l.b16 %v475
    %v512 = vunpack.c.l.b16 %v476
    %v513 = vunpack.c.l.b16 %v477
    %v514 = vunpack.c.l.b16 %v478
    %v515 = vunpack.c.l.b16 %v479
    %v516 = vunpack.c.l.b16 %v480
    %v517 = vunpack.c.l.b16 %v481
    %v518 = vpack.c.b16 %v503, %v502
    %v519 = vpack.c.b16 %v505, %v504
    %v520 = vpack.c.b16 %v507, %v506
    %v521 = vpack.c.b16 %v509, %v508
    %v522 = vpack.c.b16 %v511, %v510
    %v523 = vpack.c.b16 %v513, %v512
    %v524 = vpack.c.b16 %v515, %v514
    %v525 = vpack.c.b16 %v517, %v516
    %534 = vmatpush.bf16.msra.mxu0 %v525
    %535 = vmatpush.bf16.msra.mxu0 %v524
    %536 = vmatpush.bf16.msra.mxu0 %v523
    %537 = vmatpush.bf16.msra.mxu0 %v522
    %538 = vmatpush.bf16.msra.mxu0 %v521
    %539 = vmatpush.bf16.msra.mxu0 %v520
    %540 = vmatpush.bf16.msra.mxu0 %v519
    %541 = vmatpush.bf16.msra.mxu0 %v518
    %542 = vmatmul.bf16.gmra.mxu0 %v465
    %v543 = vpop.f32.mrf.mxu0
    %v544 = vadd.f32 %v484, %v543
    %v545 = vpop.f32.mrf.mxu0
    %546 = vdwg.mxu0
    %v547 = vmax.f32 %v544, 0.0
    %v548 = vadd.f32 %v547, %v337
    %v549 = vpack.c.bf16 %v548, %v548
    %v550 = vld [vmem:[#allocation13] sm:$0xff]
    %v551 = vld [vmem:[#allocation13 + $0x8] sm:$0xff]
    %v552 = vld [vmem:[#allocation13 + $0x10] sm:$0xff]
    %v553 = vld [vmem:[#allocation13 + $0x18] sm:$0xff]
    %v554 = vld [vmem:[#allocation13 + $0x20] sm:$0xff]
    %v555 = vld [vmem:[#allocation13 + $0x28] sm:$0xff]
    %v556 = vld [vmem:[#allocation13 + $0x30] sm:$0xff]
    %v557 = vld [vmem:[#allocation13 + $0x38] sm:$0xff]
    %v558 = vld [vmem:[#allocation13 + $0x40] sm:$0xff]
    %v559 = vld [vmem:[#allocation13 + $0x48] sm:$0xff]
    %v560 = vld [vmem:[#allocation13 + $0x50] sm:$0xff]
    %v561 = vld [vmem:[#allocation13 + $0x58] sm:$0xff]
    %v562 = vld [vmem:[#allocation13 + $0x60] sm:$0xff]
    %v563 = vld [vmem:[#allocation13 + $0x68] sm:$0xff]
    %v564 = vld [vmem:[#allocation13 + $0x70] sm:$0xff]
    %v565 = vld [vmem:[#allocation13 + $0x78] sm:$0xff]
    %v566 = vld [vmem:[%s11] sm:$0x3]
    %v568 = vperm.slane %v566, 0
    %v569 = vperm.slane %v566, 1
    %v588 = vunpack.c.l.b16 %v550
    %v589 = vunpack.c.h.b16 %v550
    %v590 = vunpack.c.l.b16 %v551
    %v591 = vunpack.c.h.b16 %v551
    %v592 = vunpack.c.l.b16 %v552
    %v593 = vunpack.c.h.b16 %v552
    %v594 = vunpack.c.l.b16 %v553
    %v595 = vunpack.c.h.b16 %v553
    %v596 = vunpack.c.l.b16 %v554
    %v597 = vunpack.c.h.b16 %v554
    %v598 = vunpack.c.l.b16 %v555
    %v599 = vunpack.c.h.b16 %v555
    %v600 = vunpack.c.l.b16 %v556
    %v601 = vunpack.c.h.b16 %v556
    %v602 = vunpack.c.l.b16 %v557
    %v603 = vunpack.c.h.b16 %v557
    %v604 = vunpack.c.l.b16 %v558
    %v605 = vunpack.c.h.b16 %v558
    %v606 = vunpack.c.l.b16 %v559
    %v607 = vunpack.c.h.b16 %v559
    %v608 = vunpack.c.l.b16 %v560
    %v609 = vunpack.c.h.b16 %v560
    %v610 = vunpack.c.l.b16 %v561
    %v611 = vunpack.c.h.b16 %v561
    %v612 = vunpack.c.l.b16 %v562
    %v613 = vunpack.c.h.b16 %v562
    %v614 = vunpack.c.l.b16 %v563
    %v615 = vunpack.c.h.b16 %v563
    %v616 = vunpack.c.l.b16 %v564
    %v617 = vunpack.c.h.b16 %v564
    %v618 = vunpack.c.l.b16 %v565
    %v619 = vunpack.c.h.b16 %v565
    %v620 = vpack.c.b16 %v590, %v588
    %v621 = vpack.c.b16 %v591, %v589
    %v622 = vpack.c.b16 %v594, %v592
    %v623 = vpack.c.b16 %v595, %v593
    %v624 = vpack.c.b16 %v598, %v596
    %v625 = vpack.c.b16 %v599, %v597
    %v626 = vpack.c.b16 %v602, %v600
    %v627 = vpack.c.b16 %v603, %v601
    %v628 = vpack.c.b16 %v606, %v604
    %v629 = vpack.c.b16 %v607, %v605
    %v630 = vpack.c.b16 %v610, %v608
    %v631 = vpack.c.b16 %v611, %v609
    %v632 = vpack.c.b16 %v614, %v612
    %v633 = vpack.c.b16 %v615, %v613
    %v634 = vpack.c.b16 %v618, %v616
    %v635 = vpack.c.b16 %v619, %v617
    %652 = vmatpush.bf16.msra.mxu0 %v634
    %653 = vmatpush.bf16.msra.mxu0 %v632
    %654 = vmatpush.bf16.msra.mxu0 %v630
    %655 = vmatpush.bf16.msra.mxu0 %v628
    %656 = vmatpush.bf16.msra.mxu0 %v626
    %657 = vmatpush.bf16.msra.mxu0 %v624
    %658 = vmatpush.bf16.msra.mxu0 %v622
    %659 = vmatpush.bf16.msra.mxu0 %v620
    %660 = vmatmul.bf16.gmra.mxu0 %v549
    %v661 = vpop.f32.mrf.mxu0
    %v662 = vadd.f32 %v568, %v661
    %v663 = vpop.f32.mrf.mxu0
    %664 = vdwg.mxu0
    %665 = vmatpush.bf16.msra.mxu0 %v635
    %666 = vmatpush.bf16.msra.mxu0 %v633
    %667 = vmatpush.bf16.msra.mxu0 %v631
    %668 = vmatpush.bf16.msra.mxu0 %v629
    %669 = vmatpush.bf16.msra.mxu0 %v627
    %670 = vmatpush.bf16.msra.mxu0 %v625
    %671 = vmatpush.bf16.msra.mxu0 %v623
    %672 = vmatpush.bf16.msra.mxu0 %v621
    %673 = vmatmul.bf16.gmra.mxu0 %v549
    %v674 = vpop.f32.mrf.mxu0
    %v675 = vadd.f32 %v569, %v674
    %v676 = vpop.f32.mrf.mxu0
    %677 = vdwg.mxu0
    %678 = vst [vmem:[#allocation14] sm:$0xff] %v662
    %v679 = vmax.f32 %v675, 0.0
    %v680 = vand.u32 2147483647, %v675
    %v681 = vsub.f32 0.0, %v680
    %v682 = vmul.f32 %v681, 1.442695
    %v683 = vpow.pop %v682
    %v684 = vadd.f32 %v683, 1.0
    %v685 = vlog2.pop %v684
    %v686 = vmul.f32 %v685, 0.6931472
    %v687 = vadd.f32 %v679, %v686
    %688 = vst [vmem:[#allocation14 + $0x8] sm:$0xff] %v687
    // Predicated region
    $region78: #{tpu_custom_call.1} parent=1 // pred_check
      _
    $region79: #{tpu_custom_call.1} parent=1 // pred_check_branch
      %690 = sbr.rel (0) target = $region81
    $region80: #{tpu_custom_call.1} parent=1 // pred_region
      %692 = vsyncadd [#allocation4], 0
      %s694 = sshll.u32 [#allocation14], 4
      %s695 = int_to_ptr.vmem [resolvable:$true] %s694
      %s696 = sshll.u32 %s12, 4
      %s697 = int_to_ptr.hbm [resolvable:$true] %s696
      %699 = dma.vmem_to_hbm [thread:$0]  %s695, 256, %s697, [#allocation4]
    $region81: #{tpu_custom_call.1} parent=1 // pred_fallthru
      _
    // Predicated region
    $region82: #{tpu_custom_call.1} parent=1 // pred_check
      _
    $region83: #{tpu_custom_call.1} parent=1 // pred_check_branch
      %701 = sbr.rel (0) target = $region85
    $region84: #{tpu_custom_call.1} parent=1 // pred_region
      %703 = dma.done [#allocation4], 256
    $region85: #{tpu_custom_call.1} parent=1 // pred_fallthru
      _
    %704 = vsyncpa [#allocation3], 1
    %705 = vsyncpa [#allocation6], 1
    %706 = vsyncpa [#allocation9], 1
    %707 = vsyncpa [#allocation12], 1
    %708 = vsyncpa [#allocation4], 1

// kernel: tpu_custom_call.1
$region0: #{tpu_custom_call.1}
  #allocation0 [shape = 'u32[]', space=smem, size = 0x4, offset = 0x4, fixed_abs, tag = 'smem constant byte address 0x4 - core index']
  #allocation1 [shape = 'u32[72,128]{1,0:T(1,128)}', space=vmem, size = 0x9000, scoped, tag = 'internal scratch']
  %s0 = inlined_call_operand.hbm [shape: s32[8,16], index: 0, kind: input, shape index: {}]
  %s1 = inlined_call_operand.hbm [shape: f32[8,5], index: 1, kind: input, shape index: {}]
  %s2 = inlined_call_operand.hbm [shape: bf16[128,128], index: 2, kind: input, shape index: {}]
  %s3 = inlined_call_operand.vmem [shape: f32[1,128], index: 3, kind: input, shape index: {}]
  %s4 = inlined_call_operand.hbm [shape: bf16[128,128], index: 4, kind: input, shape index: {}]
  %s5 = inlined_call_operand.vmem [shape: f32[1,128], index: 5, kind: input, shape index: {}]
  %s6 = inlined_call_operand.hbm [shape: f32[5,128], index: 6, kind: input, shape index: {}]
  %s7 = inlined_call_operand.vmem [shape: f32[1,128], index: 7, kind: input, shape index: {}]
  %s8 = inlined_call_operand.hbm [shape: bf16[1,128,128], index: 8, kind: input, shape index: {}]
  %s9 = inlined_call_operand.vmem [shape: f32[1,128], index: 9, kind: input, shape index: {}]
  %s10 = inlined_call_operand.hbm [shape: bf16[128,256], index: 10, kind: input, shape index: {}]
  %s11 = inlined_call_operand.vmem [shape: f32[1,256], index: 11, kind: input, shape index: {}]
  %s12 = inlined_call_operand.hbm [shape: f32[8,256], index: 12, kind: output, shape index: {}]
  %s13 = sld [smem:[#allocation0]]
  $region86: #{tpu_custom_call.1} parent=0
    _
  %s15 = ssub.s32 1, %s13
  %s16 = scalar_select 0, %s15, %s13
  $region1: #{tpu_custom_call.1} parent=0
    #allocation2 [shape = 'u8[4096]{0}', space=vmem, size = 0x1000, scoped, tag = 'input window, operand 0, single buffered']
    #allocation3 [shape = 's32[1]{0}', space=sflag, size = 0x4, scoped, tag = 'scoped memory for tpu_custom_call.1']
    #allocation4 [shape = 's32[1]{0}', space=sflag, size = 0x4, scoped, tag = 'scoped memory for tpu_custom_call.1']
    #allocation5 [shape = 'u8[4096]{0}', space=vmem, size = 0x1000, scoped, tag = 'input window, operand 1, single buffered']
    #allocation6 [shape = 's32[1]{0}', space=sflag, size = 0x4, scoped, tag = 'scoped memory for tpu_custom_call.1']
    #allocation7 [shape = 'u8[32768]{0}', space=vmem, size = 0x8000, scoped, tag = 'input window, operand 2, single buffered']
    #allocation8 [shape = 'u8[32768]{0}', space=vmem, size = 0x8000, scoped, tag = 'input window, operand 4, single buffered']
    #allocation9 [shape = 's32[1]{0}', space=sflag, size = 0x4, scoped, tag = 'scoped memory for tpu_custom_call.1']
    #allocation10 [shape = 'u8[4096]{0}', space=vmem, size = 0x1000, scoped, tag = 'input window, operand 6, single buffered']
    #allocation11 [shape = 'u8[32768]{0}', space=vmem, size = 0x8000, scoped, tag = 'input window, operand 8, single buffered']
    #allocation12 [shape = 's32[1]{0}', space=sflag, size = 0x4, scoped, tag = 'scoped memory for tpu_custom_call.1']
    #allocation13 [shape = 'u8[65536]{0}', space=vmem, size = 0x10000, scoped, tag = 'input window, operand 10, single buffered']
    #allocation14 [shape = 'u8[8192]{0}', space=vmem, size = 0x2000, scoped, tag = 'output window, operand 0, single buffered']
    %17 = vsyncpa [#allocation3], 0
    %18 = vsyncpa [#allocation6], 0
    %19 = vsyncpa [#allocation9], 0
    %20 = vsyncpa [#allocation12], 0
    %21 = vsyncpa [#allocation4], 0
    // Predicated region
    $region2: #{tpu_custom_call.1} parent=1 // pred_check
      _
    $region3: #{tpu_custom_call.1} parent=1 // pred_check_branch
      %23 = sbr.rel (0) target = $region5
    $region4: #{tpu_custom_call.1} parent=1 // pred_region
      %25 = vsyncadd [#allocation3], 0
      %s27 = sshll.u32 %s0, 4
      %s28 = int_to_ptr.hbm [resolvable:$true] %s27
      %s29 = sshll.u32 [#allocation2], 4
      %s30 = int_to_ptr.vmem [resolvable:$true] %s29
      %32 = dma.hbm_to_vmem [thread:$0]  %s28, 128, %s30, [#allocation3]
    $region5: #{tpu_custom_call.1} parent=1 // pred_fallthru
      _
    // Predicated region
    $region6: #{tpu_custom_call.1} parent=1 // pred_check
      _
    $region7: #{tpu_custom_call.1} parent=1 // pred_check_branch
      %34 = sbr.rel (0) target = $region9
    $region8: #{tpu_custom_call.1} parent=1 // pred_region
      %36 = vsyncadd [#allocation6], 0
      %s38 = sshll.u32 %s1, 4
      %s39 = int_to_ptr.hbm [resolvable:$true] %s38
      %s40 = sshll.u32 [#allocation5], 4
      %s41 = int_to_ptr.vmem [resolvable:$true] %s40
      %43 = dma.hbm_to_vmem [thread:$0]  %s39, 128, %s41, [#allocation6]
    $region9: #{tpu_custom_call.1} parent=1 // pred_fallthru
      _
    // Predicated region
    $region10: #{tpu_custom_call.1} parent=1 // pred_check
      _
    $region11: #{tpu_custom_call.1} parent=1 // pred_check_branch
      %45 = sbr.rel (0) target = $region13
    $region12: #{tpu_custom_call.1} parent=1 // pred_region
      %47 = vsyncadd [#allocation6], 0
      %s48 = sshll.u32 %s2, 4
      %s49 = int_to_ptr.hbm [resolvable:$true] %s48
      %s50 = sshll.u32 [#allocation7], 4
      %s51 = int_to_ptr.vmem [resolvable:$true] %s50
      %56 = dma.hbm_to_vmem [thread:$0]  %s49, 1024, %s51, [#allocation6], 64, 64, 4
    $region13: #{tpu_custom_call.1} parent=1 // pred_fallthru
      _
    // Predicated region
    $region14: #{tpu_custom_call.1} parent=1 // pred_check
      _
    $region15: #{tpu_custom_call.1} parent=1 // pred_check_branch
      %58 = sbr.rel (0) target = $region17
    $region16: #{tpu_custom_call.1} parent=1 // pred_region
      _
    $region17: #{tpu_custom_call.1} parent=1 // pred_fallthru
      _
    // Predicated region
    $region18: #{tpu_custom_call.1} parent=1 // pred_check
      _
    $region19: #{tpu_custom_call.1} parent=1 // pred_check_branch
      %60 = sbr.rel (0) target = $region21
    $region20: #{tpu_custom_call.1} parent=1 // pred_region
      %62 = vsyncadd [#allocation9], 0
      %s63 = sshll.u32 %s4, 4
      %s64 = int_to_ptr.hbm [resolvable:$true] %s63
      %s65 = sshll.u32 [#allocation8], 4
      %s66 = int_to_ptr.vmem [resolvable:$true] %s65
      %71 = dma.hbm_to_vmem [thread:$0]  %s64, 1024, %s66, [#allocation9], 64, 64, 4
    $region21: #{tpu_custom_call.1} parent=1 // pred_fallthru
      _
    // Predicated region
    $region22: #{tpu_custom_call.1} parent=1 // pred_check
      _
    $region23: #{tpu_custom_call.1} parent=1 // pred_check_branch
      %73 = sbr.rel (0) target = $region25
    $region24: #{tpu_custom_call.1} parent=1 // pred_region
      _
    $region25: #{tpu_custom_call.1} parent=1 // pred_fallthru
      _
    // Predicated region
    $region26: #{tpu_custom_call.1} parent=1 // pred_check
      _
    $region27: #{tpu_custom_call.1} parent=1 // pred_check_branch
      %75 = sbr.rel (0) target = $region29
    $region28: #{tpu_custom_call.1} parent=1 // pred_region
      %77 = vsyncadd [#allocation9], 0
      %s79 = sshll.u32 %s6, 4
      %s80 = int_to_ptr.hbm [resolvable:$true] %s79
      %s81 = sshll.u32 [#allocation10], 4
      %s82 = int_to_ptr.vmem [resolvable:$true] %s81
      %84 = dma.hbm_to_vmem [thread:$0]  %s80, 128, %s82, [#allocation9]
    $region29: #{tpu_custom_call.1} parent=1 // pred_fallthru
      _
    // Predicated region
    $region30: #{tpu_custom_call.1} parent=1 // pred_check
      _
    $region31: #{tpu_custom_call.1} parent=1 // pred_check_branch
      %86 = sbr.rel (0) target = $region33
    $region32: #{tpu_custom_call.1} parent=1 // pred_region
      _
    $region33: #{tpu_custom_call.1} parent=1 // pred_fallthru
      _
    // Predicated region
    $region34: #{tpu_custom_call.1} parent=1 // pred_check
      _
    $region35: #{tpu_custom_call.1} parent=1 // pred_check_branch
      %88 = sbr.rel (0) target = $region37
    $region36: #{tpu_custom_call.1} parent=1 // pred_region
      %90 = vsyncadd [#allocation12], 0
      %s91 = sshll.u32 %s8, 4
      %s92 = int_to_ptr.hbm [resolvable:$true] %s91
      %s93 = sshll.u32 [#allocation11], 4
      %s94 = int_to_ptr.vmem [resolvable:$true] %s93
      %99 = dma.hbm_to_vmem [thread:$0]  %s92, 1024, %s94, [#allocation12], 64, 64, 4
    $region37: #{tpu_custom_call.1} parent=1 // pred_fallthru
      _
    // Predicated region
    $region38: #{tpu_custom_call.1} parent=1 // pred_check
      _
    $region39: #{tpu_custom_call.1} parent=1 // pred_check_branch
      %101 = sbr.rel (0) target = $region41
    $region40: #{tpu_custom_call.1} parent=1 // pred_region
      _
    $region41: #{tpu_custom_call.1} parent=1 // pred_fallthru
      _
    // Predicated region
    $region42: #{tpu_custom_call.1} parent=1 // pred_check
      _
    $region43: #{tpu_custom_call.1} parent=1 // pred_check_branch
      %103 = sbr.rel (0) target = $region45
    $region44: #{tpu_custom_call.1} parent=1 // pred_region
      %105 = vsyncadd [#allocation12], 0
      %s106 = sshll.u32 %s10, 4
      %s107 = int_to_ptr.hbm [resolvable:$true] %s106
      %s108 = sshll.u32 [#allocation13], 4
      %s109 = int_to_ptr.vmem [resolvable:$true] %s108
      %114 = dma.hbm_to_vmem [thread:$0]  %s107, 2048, %s109, [#allocation12], 128, 128, 8
    $region45: #{tpu_custom_call.1} parent=1 // pred_fallthru
      _
    // Predicated region
    $region46: #{tpu_custom_call.1} parent=1 // pred_check
      _
    $region47: #{tpu_custom_call.1} parent=1 // pred_check_branch
      %116 = sbr.rel (0) target = $region49
    $region48: #{tpu_custom_call.1} parent=1 // pred_region
      _
    $region49: #{tpu_custom_call.1} parent=1 // pred_fallthru
      _
    // Predicated region
    $region50: #{tpu_custom_call.1} parent=1 // pred_check
      _
    $region51: #{tpu_custom_call.1} parent=1 // pred_check_branch
      %118 = sbr.rel (0) target = $region53
    $region52: #{tpu_custom_call.1} parent=1 // pred_region
      %120 = dma.done [#allocation3], 128
    $region53: #{tpu_custom_call.1} parent=1 // pred_fallthru
      _
    // Predicated region
    $region54: #{tpu_custom_call.1} parent=1 // pred_check
      _
    $region55: #{tpu_custom_call.1} parent=1 // pred_check_branch
      %122 = sbr.rel (0) target = $region57
    $region56: #{tpu_custom_call.1} parent=1 // pred_region
      %124 = dma.done [#allocation6], 128
    $region57: #{tpu_custom_call.1} parent=1 // pred_fallthru
      _
    // Predicated region
    $region58: #{tpu_custom_call.1} parent=1 // pred_check
      _
    $region59: #{tpu_custom_call.1} parent=1 // pred_check_branch
      %126 = sbr.rel (0) target = $region61
    $region60: #{tpu_custom_call.1} parent=1 // pred_region
      %128 = dma.done [#allocation6], 1024
    $region61: #{tpu_custom_call.1} parent=1 // pred_fallthru
      _
    // Predicated region
    $region62: #{tpu_custom_call.1} parent=1 // pred_check
      _
    $region63: #{tpu_custom_call.1} parent=1 // pred_check_branch
      %130 = sbr.rel (0) target = $region65
    $region64: #{tpu_custom_call.1} parent=1 // pred_region
      %132 = dma.done [#allocation9], 1024
    $region65: #{tpu_custom_call.1} parent=1 // pred_fallthru
      _
    // Predicated region
    $region66: #{tpu_custom_call.1} parent=1 // pred_check
      _
    $region67: #{tpu_custom_call.1} parent=1 // pred_check_branch
      %134 = sbr.rel (0) target = $region69
    $region68: #{tpu_custom_call.1} parent=1 // pred_region
      %136 = dma.done [#allocation9], 128
    $region69: #{tpu_custom_call.1} parent=1 // pred_fallthru
      _
    // Predicated region
    $region70: #{tpu_custom_call.1} parent=1 // pred_check
      _
    $region71: #{tpu_custom_call.1} parent=1 // pred_check_branch
      %138 = sbr.rel (0) target = $region73
    $region72: #{tpu_custom_call.1} parent=1 // pred_region
      %140 = dma.done [#allocation12], 1024
    $region73: #{tpu_custom_call.1} parent=1 // pred_fallthru
      _
    // Predicated region
    $region74: #{tpu_custom_call.1} parent=1 // pred_check
      _
    $region75: #{tpu_custom_call.1} parent=1 // pred_check_branch
      %142 = sbr.rel (0) target = $region77
    $region76: #{tpu_custom_call.1} parent=1 // pred_region
      %144 = dma.done [#allocation12], 2048
    $region77: #{tpu_custom_call.1} parent=1 // pred_fallthru
      _
    %v145 = vld [vmem:[#allocation2] sm:$0xff]
    %v146 = vlaneseq
    %v147 = vand.u32 %v146, 127
    %148 = vset.pattern.permute.xlu0 0
    %149 = vperm.xlu0 %148, %v145
    %v150 = vpop.permute.xlu0 %149
    %vm151 = vcmp.eq.s32.totalorder %v150, %v147
    %v152 = vsel %vm151, 1, 0
    %153 = vset.pattern.permute.xlu0 1
    %154 = vperm.xlu0 %153, %v145
    %v155 = vpop.permute.xlu0 %154
    %vm156 = vcmp.eq.s32.totalorder %v155, %v147
    %v157 = vsel %vm156, 1, 0
    %v158 = vadd.s32 %v152, %v157
    %159 = vset.pattern.permute.xlu0 2
    %160 = vperm.xlu0 %159, %v145
    %v161 = vpop.permute.xlu0 %160
    %vm162 = vcmp.eq.s32.totalorder %v161, %v147
    %v163 = vsel %vm162, 1, 0
    %v164 = vadd.s32 %v158, %v163
    %165 = vset.pattern.permute.xlu0 3
    %166 = vperm.xlu0 %165, %v145
    %v167 = vpop.permute.xlu0 %166
    %vm168 = vcmp.eq.s32.totalorder %v167, %v147
    %v169 = vsel %vm168, 1, 0
    %v170 = vadd.s32 %v164, %v169
    %171 = vset.pattern.permute.xlu0 4
    %172 = vperm.xlu0 %171, %v145
    %v173 = vpop.permute.xlu0 %172
    %vm174 = vcmp.eq.s32.totalorder %v173, %v147
    %v175 = vsel %vm174, 1, 0
    %v176 = vadd.s32 %v170, %v175
    %177 = vset.pattern.permute.xlu0 5
    %178 = vperm.xlu0 %177, %v145
    %v179 = vpop.permute.xlu0 %178
    %vm180 = vcmp.eq.s32.totalorder %v179, %v147
    %v181 = vsel %vm180, 1, 0
    %v182 = vadd.s32 %v176, %v181
    %183 = vset.pattern.permute.xlu0 6
    %184 = vperm.xlu0 %183, %v145
    %v185 = vpop.permute.xlu0 %184
    %vm186 = vcmp.eq.s32.totalorder %v185, %v147
    %v187 = vsel %vm186, 1, 0
    %v188 = vadd.s32 %v182, %v187
    %189 = vset.pattern.permute.xlu0 7
    %190 = vperm.xlu0 %189, %v145
    %v191 = vpop.permute.xlu0 %190
    %vm192 = vcmp.eq.s32.totalorder %v191, %v147
    %v193 = vsel %vm192, 1, 0
    %v194 = vadd.s32 %v188, %v193
    %195 = vset.pattern.permute.xlu0 8
    %196 = vperm.xlu0 %195, %v145
    %v197 = vpop.permute.xlu0 %196
    %vm198 = vcmp.eq.s32.totalorder %v197, %v147
    %v199 = vsel %vm198, 1, 0
    %v200 = vadd.s32 %v194, %v199
    %201 = vset.pattern.permute.xlu0 9
    %202 = vperm.xlu0 %201, %v145
    %v203 = vpop.permute.xlu0 %202
    %vm204 = vcmp.eq.s32.totalorder %v203, %v147
    %v205 = vsel %vm204, 1, 0
    %v206 = vadd.s32 %v200, %v205
    %207 = vset.pattern.permute.xlu0 10
    %208 = vperm.xlu0 %207, %v145
    %v209 = vpop.permute.xlu0 %208
    %vm210 = vcmp.eq.s32.totalorder %v209, %v147
    %v211 = vsel %vm210, 1, 0
    %v212 = vadd.s32 %v206, %v211
    %213 = vset.pattern.permute.xlu0 11
    %214 = vperm.xlu0 %213, %v145
    %v215 = vpop.permute.xlu0 %214
    %vm216 = vcmp.eq.s32.totalorder %v215, %v147
    %v217 = vsel %vm216, 1, 0
    %v218 = vadd.s32 %v212, %v217
    %219 = vset.pattern.permute.xlu0 12
    %220 = vperm.xlu0 %219, %v145
    %v221 = vpop.permute.xlu0 %220
    %vm222 = vcmp.eq.s32.totalorder %v221, %v147
    %v223 = vsel %vm222, 1, 0
    %v224 = vadd.s32 %v218, %v223
    %225 = vset.pattern.permute.xlu0 13
    %226 = vperm.xlu0 %225, %v145
    %v227 = vpop.permute.xlu0 %226
    %vm228 = vcmp.eq.s32.totalorder %v227, %v147
    %v229 = vsel %vm228, 1, 0
    %v230 = vadd.s32 %v224, %v229
    %231 = vset.pattern.permute.xlu0 14
    %232 = vperm.xlu0 %231, %v145
    %v233 = vpop.permute.xlu0 %232
    %vm234 = vcmp.eq.s32.totalorder %v233, %v147
    %v235 = vsel %vm234, 1, 0
    %v236 = vadd.s32 %v230, %v235
    %237 = vset.pattern.permute.xlu0 15
    %238 = vperm.xlu0 %237, %v145
    %v239 = vpop.permute.xlu0 %238
    %vm240 = vcmp.eq.s32.totalorder %v239, %v147
    %v241 = vsel %vm240, 1, 0
    %v242 = vadd.s32 %v236, %v241
    %v243 = vcvt.s32.f32 %v242
    %v244 = vpack.c.bf16 %v243, %v243
    %vm245 = vcmp.gt.s32.totalorder %v145, 0
    %v246 = vsel %vm245, 1, 0
    %v247 = vcvt.s32.f32 %v246
    %vm248 = vcmask 130048
    %v249 = vsel %vm248, %v247, 0.0
    %250 = vadd.xlane.f32.xlu0 %v249
    %v251 = vpop.xlane.xlu0 %250
    %v252 = vrcp.pop %v251
    %v253 = vlog2.pop %v251
    %v254 = vmul.f32 %v253, 0.6931472
    %v255 = vld [vmem:[#allocation7] sm:$0xf]
    %v256 = vld [vmem:[#allocation7 + $0x4] sm:$0xf]
    %v257 = vld [vmem:[#allocation7 + $0x8] sm:$0xf]
    %v258 = vld [vmem:[#allocation7 + $0xc] sm:$0xf]
    %v259 = vld [vmem:[#allocation7 + $0x10] sm:$0xf]
    %v260 = vld [vmem:[#allocation7 + $0x14] sm:$0xf]
    %v261 = vld [vmem:[#allocation7 + $0x18] sm:$0xf]
    %v262 = vld [vmem:[#allocation7 + $0x1c] sm:$0xf]
    %v263 = vld [vmem:[#allocation7 + $0x20] sm:$0xf]
    %v264 = vld [vmem:[#allocation7 + $0x24] sm:$0xf]
    %v265 = vld [vmem:[#allocation7 + $0x28] sm:$0xf]
    %v266 = vld [vmem:[#allocation7 + $0x2c] sm:$0xf]
    %v267 = vld [vmem:[#allocation7 + $0x30] sm:$0xf]
    %v268 = vld [vmem:[#allocation7 + $0x34] sm:$0xf]
    %v269 = vld [vmem:[#allocation7 + $0x38] sm:$0xf]
    %v270 = vld [vmem:[#allocation7 + $0x3c] sm:$0xf]
    %v287 = vunpack.c.l.b16 %v255
    %v288 = vunpack.c.l.b16 %v256
    %v289 = vunpack.c.l.b16 %v257
    %v290 = vunpack.c.l.b16 %v258
    %v291 = vunpack.c.l.b16 %v259
    %v292 = vunpack.c.l.b16 %v260
    %v293 = vunpack.c.l.b16 %v261
    %v294 = vunpack.c.l.b16 %v262
    %v295 = vunpack.c.l.b16 %v263
    %v296 = vunpack.c.l.b16 %v264
    %v297 = vunpack.c.l.b16 %v265
    %v298 = vunpack.c.l.b16 %v266
    %v299 = vunpack.c.l.b16 %v267
    %v300 = vunpack.c.l.b16 %v268
    %v301 = vunpack.c.l.b16 %v269
    %v302 = vunpack.c.l.b16 %v270
    %v303 = vpack.c.b16 %v288, %v287
    %v304 = vpack.c.b16 %v290, %v289
    %v305 = vpack.c.b16 %v292, %v291
    %v306 = vpack.c.b16 %v294, %v293
    %v307 = vpack.c.b16 %v296, %v295
    %v308 = vpack.c.b16 %v298, %v297
    %v309 = vpack.c.b16 %v300, %v299
    %v310 = vpack.c.b16 %v302, %v301
    %319 = vmatpush.bf16.msra.mxu0 %v310
    %320 = vmatpush.bf16.msra.mxu0 %v309
    %321 = vmatpush.bf16.msra.mxu0 %v308
    %322 = vmatpush.bf16.msra.mxu0 %v307
    %323 = vmatpush.bf16.msra.mxu0 %v306
    %324 = vmatpush.bf16.msra.mxu0 %v305
    %325 = vmatpush.bf16.msra.mxu0 %v304
    %326 = vmatpush.bf16.msra.mxu0 %v303
    %327 = vmatmul.bf16.gmra.mxu0 %v244
    %v328 = vpop.f32.mrf.mxu0
    %v329 = vadd.f32 0.0, %v328
    %v330 = vpop.f32.mrf.mxu0
    %331 = vdwg.mxu0
    %v332 = vmul.f32 %v329, %v252
    %v333 = vld [vmem:[%s3] sm:$0x1]
    %v335 = vperm.slane %v333, 0
    %v337 = vadd.f32 %v332, %v335
    %v338 = vpack.c.bf16 %v337, %v337
    %v339 = vld [vmem:[#allocation8] sm:$0xf]
    %v340 = vld [vmem:[#allocation8 + $0x4] sm:$0xf]
    %v341 = vld [vmem:[#allocation8 + $0x8] sm:$0xf]
    %v342 = vld [vmem:[#allocation8 + $0xc] sm:$0xf]
    %v343 = vld [vmem:[#allocation8 + $0x10] sm:$0xf]
    %v344 = vld [vmem:[#allocation8 + $0x14] sm:$0xf]
    %v345 = vld [vmem:[#allocation8 + $0x18] sm:$0xf]
    %v346 = vld [vmem:[#allocation8 + $0x1c] sm:$0xf]
    %v347 = vld [vmem:[#allocation8 + $0x20] sm:$0xf]
    %v348 = vld [vmem:[#allocation8 + $0x24] sm:$0xf]
    %v349 = vld [vmem:[#allocation8 + $0x28] sm:$0xf]
    %v350 = vld [vmem:[#allocation8 + $0x2c] sm:$0xf]
    %v351 = vld [vmem:[#allocation8 + $0x30] sm:$0xf]
    %v352 = vld [vmem:[#allocation8 + $0x34] sm:$0xf]
    %v353 = vld [vmem:[#allocation8 + $0x38] sm:$0xf]
    %v354 = vld [vmem:[#allocation8 + $0x3c] sm:$0xf]
    %v355 = vld [vmem:[%s5] sm:$0x1]
    %v357 = vperm.slane %v355, 0
    %v359 = vmul.f32 %v254, %v357
    %v376 = vunpack.c.l.b16 %v339
    %v377 = vunpack.c.l.b16 %v340
    %v378 = vunpack.c.l.b16 %v341
    %v379 = vunpack.c.l.b16 %v342
    %v380 = vunpack.c.l.b16 %v343
    %v381 = vunpack.c.l.b16 %v344
    %v382 = vunpack.c.l.b16 %v345
    %v383 = vunpack.c.l.b16 %v346
    %v384 = vunpack.c.l.b16 %v347
    %v385 = vunpack.c.l.b16 %v348
    %v386 = vunpack.c.l.b16 %v349
    %v387 = vunpack.c.l.b16 %v350
    %v388 = vunpack.c.l.b16 %v351
    %v389 = vunpack.c.l.b16 %v352
    %v390 = vunpack.c.l.b16 %v353
    %v391 = vunpack.c.l.b16 %v354
    %v392 = vpack.c.b16 %v377, %v376
    %v393 = vpack.c.b16 %v379, %v378
    %v394 = vpack.c.b16 %v381, %v380
    %v395 = vpack.c.b16 %v383, %v382
    %v396 = vpack.c.b16 %v385, %v384
    %v397 = vpack.c.b16 %v387, %v386
    %v398 = vpack.c.b16 %v389, %v388
    %v399 = vpack.c.b16 %v391, %v390
    %408 = vmatpush.bf16.msra.mxu0 %v399
    %409 = vmatpush.bf16.msra.mxu0 %v398
    %410 = vmatpush.bf16.msra.mxu0 %v397
    %411 = vmatpush.bf16.msra.mxu0 %v396
    %412 = vmatpush.bf16.msra.mxu0 %v395
    %413 = vmatpush.bf16.msra.mxu0 %v394
    %414 = vmatpush.bf16.msra.mxu0 %v393
    %415 = vmatpush.bf16.msra.mxu0 %v392
    %416 = vmatmul.bf16.gmra.mxu0 %v338
    %v417 = vpop.f32.mrf.mxu0
    %v418 = vadd.f32 %v359, %v417
    %v419 = vpop.f32.mrf.mxu0
    %420 = vdwg.mxu0
    %v421 = vld [vmem:[#allocation5] sm:$0xff]
    %v422 = vld [vmem:[#allocation10] sm:$0x1f]
    %424 = vset.pattern.permute.xlu0 0
    %425 = vperm.xlu0 %424, %v421
    %v426 = vpop.permute.xlu0 %425
    %v428 = vperm.slane %v422, 0
    %v429 = vmul.f32 %v426, %v428
    %v430 = vadd.f32 %v418, %v429
    %431 = vset.pattern.permute.xlu0 1
    %432 = vperm.xlu0 %431, %v421
    %v433 = vpop.permute.xlu0 %432
    %v435 = vperm.slane %v422, 1
    %v436 = vmul.f32 %v433, %v435
    %v437 = vadd.f32 %v430, %v436
    %438 = vset.pattern.permute.xlu0 2
    %439 = vperm.xlu0 %438, %v421
    %v440 = vpop.permute.xlu0 %439
    %v442 = vperm.slane %v422, 2
    %v443 = vmul.f32 %v440, %v442
    %v444 = vadd.f32 %v437, %v443
    %445 = vset.pattern.permute.xlu0 3
    %446 = vperm.xlu0 %445, %v421
    %v447 = vpop.permute.xlu0 %446
    %v449 = vperm.slane %v422, 3
    %v450 = vmul.f32 %v447, %v449
    %v451 = vadd.f32 %v444, %v450
    %452 = vset.pattern.permute.xlu0 4
    %453 = vperm.xlu0 %452, %v421
    %v454 = vpop.permute.xlu0 %453
    %v456 = vperm.slane %v422, 4
    %v457 = vmul.f32 %v454, %v456
    %v458 = vadd.f32 %v451, %v457
    %v459 = vld [vmem:[%s7] sm:$0x1]
    %v461 = vperm.slane %v459, 0
    %v463 = vadd.f32 %v458, %v461
    %v464 = vmax.f32 %v463, 0.0
    %v465 = vpack.c.bf16 %v464, %v464
    %v466 = vld [vmem:[#allocation11] sm:$0xf]
    %v467 = vld [vmem:[#allocation11 + $0x4] sm:$0xf]
    %v468 = vld [vmem:[#allocation11 + $0x8] sm:$0xf]
    %v469 = vld [vmem:[#allocation11 + $0xc] sm:$0xf]
    %v470 = vld [vmem:[#allocation11 + $0x10] sm:$0xf]
    %v471 = vld [vmem:[#allocation11 + $0x14] sm:$0xf]
    %v472 = vld [vmem:[#allocation11 + $0x18] sm:$0xf]
    %v473 = vld [vmem:[#allocation11 + $0x1c] sm:$0xf]
    %v474 = vld [vmem:[#allocation11 + $0x20] sm:$0xf]
    %v475 = vld [vmem:[#allocation11 + $0x24] sm:$0xf]
    %v476 = vld [vmem:[#allocation11 + $0x28] sm:$0xf]
    %v477 = vld [vmem:[#allocation11 + $0x2c] sm:$0xf]
    %v478 = vld [vmem:[#allocation11 + $0x30] sm:$0xf]
    %v479 = vld [vmem:[#allocation11 + $0x34] sm:$0xf]
    %v480 = vld [vmem:[#allocation11 + $0x38] sm:$0xf]
    %v481 = vld [vmem:[#allocation11 + $0x3c] sm:$0xf]
    %v482 = vld [vmem:[%s9] sm:$0x1]
    %v484 = vperm.slane %v482, 0
    %v502 = vunpack.c.l.b16 %v466
    %v503 = vunpack.c.l.b16 %v467
    %v504 = vunpack.c.l.b16 %v468
    %v505 = vunpack.c.l.b16 %v469
    %v506 = vunpack.c.l.b16 %v470
    %v507 = vunpack.c.l.b16 %v471
    %v508 = vunpack.c.l.b16 %v472
    %v509 = vunpack.c.l.b16 %v473
    %v510 = vunpack.c.l.b16 %v474
    %v511 = vunpack.c.l.b16 %v475
    %v512 = vunpack.c.l.b16 %v476
    %v513 = vunpack.c.l.b16 %v477
    %v514 = vunpack.c.l.b16 %v478
    %v515 = vunpack.c.l.b16 %v479
    %v516 = vunpack.c.l.b16 %v480
    %v517 = vunpack.c.l.b16 %v481
    %v518 = vpack.c.b16 %v503, %v502
    %v519 = vpack.c.b16 %v505, %v504
    %v520 = vpack.c.b16 %v507, %v506
    %v521 = vpack.c.b16 %v509, %v508
    %v522 = vpack.c.b16 %v511, %v510
    %v523 = vpack.c.b16 %v513, %v512
    %v524 = vpack.c.b16 %v515, %v514
    %v525 = vpack.c.b16 %v517, %v516
    %534 = vmatpush.bf16.msra.mxu0 %v525
    %535 = vmatpush.bf16.msra.mxu0 %v524
    %536 = vmatpush.bf16.msra.mxu0 %v523
    %537 = vmatpush.bf16.msra.mxu0 %v522
    %538 = vmatpush.bf16.msra.mxu0 %v521
    %539 = vmatpush.bf16.msra.mxu0 %v520
    %540 = vmatpush.bf16.msra.mxu0 %v519
    %541 = vmatpush.bf16.msra.mxu0 %v518
    %542 = vmatmul.bf16.gmra.mxu0 %v465
    %v543 = vpop.f32.mrf.mxu0
    %v544 = vadd.f32 %v484, %v543
    %v545 = vpop.f32.mrf.mxu0
    %546 = vdwg.mxu0
    %v547 = vmax.f32 %v544, 0.0
    %v548 = vadd.f32 %v547, %v337
    %v549 = vpack.c.bf16 %v548, %v548
    %v550 = vld [vmem:[#allocation13] sm:$0xff]
    %v551 = vld [vmem:[#allocation13 + $0x8] sm:$0xff]
    %v552 = vld [vmem:[#allocation13 + $0x10] sm:$0xff]
    %v553 = vld [vmem:[#allocation13 + $0x18] sm:$0xff]
    %v554 = vld [vmem:[#allocation13 + $0x20] sm:$0xff]
    %v555 = vld [vmem:[#allocation13 + $0x28] sm:$0xff]
    %v556 = vld [vmem:[#allocation13 + $0x30] sm:$0xff]
    %v557 = vld [vmem:[#allocation13 + $0x38] sm:$0xff]
    %v558 = vld [vmem:[#allocation13 + $0x40] sm:$0xff]
    %v559 = vld [vmem:[#allocation13 + $0x48] sm:$0xff]
    %v560 = vld [vmem:[#allocation13 + $0x50] sm:$0xff]
    %v561 = vld [vmem:[#allocation13 + $0x58] sm:$0xff]
    %v562 = vld [vmem:[#allocation13 + $0x60] sm:$0xff]
    %v563 = vld [vmem:[#allocation13 + $0x68] sm:$0xff]
    %v564 = vld [vmem:[#allocation13 + $0x70] sm:$0xff]
    %v565 = vld [vmem:[#allocation13 + $0x78] sm:$0xff]
    %v566 = vld [vmem:[%s11] sm:$0x3]
    %v568 = vperm.slane %v566, 0
    %v569 = vperm.slane %v566, 1
    %v588 = vunpack.c.l.b16 %v550
    %v589 = vunpack.c.h.b16 %v550
    %v590 = vunpack.c.l.b16 %v551
    %v591 = vunpack.c.h.b16 %v551
    %v592 = vunpack.c.l.b16 %v552
    %v593 = vunpack.c.h.b16 %v552
    %v594 = vunpack.c.l.b16 %v553
    %v595 = vunpack.c.h.b16 %v553
    %v596 = vunpack.c.l.b16 %v554
    %v597 = vunpack.c.h.b16 %v554
    %v598 = vunpack.c.l.b16 %v555
    %v599 = vunpack.c.h.b16 %v555
    %v600 = vunpack.c.l.b16 %v556
    %v601 = vunpack.c.h.b16 %v556
    %v602 = vunpack.c.l.b16 %v557
    %v603 = vunpack.c.h.b16 %v557
    %v604 = vunpack.c.l.b16 %v558
    %v605 = vunpack.c.h.b16 %v558
    %v606 = vunpack.c.l.b16 %v559
    %v607 = vunpack.c.h.b16 %v559
    %v608 = vunpack.c.l.b16 %v560
    %v609 = vunpack.c.h.b16 %v560
    %v610 = vunpack.c.l.b16 %v561
    %v611 = vunpack.c.h.b16 %v561
    %v612 = vunpack.c.l.b16 %v562
    %v613 = vunpack.c.h.b16 %v562
    %v614 = vunpack.c.l.b16 %v563
    %v615 = vunpack.c.h.b16 %v563
    %v616 = vunpack.c.l.b16 %v564
    %v617 = vunpack.c.h.b16 %v564
    %v618 = vunpack.c.l.b16 %v565
    %v619 = vunpack.c.h.b16 %v565
    %v620 = vpack.c.b16 %v590, %v588
    %v621 = vpack.c.b16 %v591, %v589
    %v622 = vpack.c.b16 %v594, %v592
    %v623 = vpack.c.b16 %v595, %v593
    %v624 = vpack.c.b16 %v598, %v596
    %v625 = vpack.c.b16 %v599, %v597
    %v626 = vpack.c.b16 %v602, %v600
    %v627 = vpack.c.b16 %v603, %v601
    %v628 = vpack.c.b16 %v606, %v604
    %v629 = vpack.c.b16 %v607, %v605
    %v630 = vpack.c.b16 %v610, %v608
    %v631 = vpack.c.b16 %v611, %v609
    %v632 = vpack.c.b16 %v614, %v612
    %v633 = vpack.c.b16 %v615, %v613
    %v634 = vpack.c.b16 %v618, %v616
    %v635 = vpack.c.b16 %v619, %v617
    %652 = vmatpush.bf16.msra.mxu0 %v634
    %653 = vmatpush.bf16.msra.mxu0 %v632
    %654 = vmatpush.bf16.msra.mxu0 %v630
    %655 = vmatpush.bf16.msra.mxu0 %v628
    %656 = vmatpush.bf16.msra.mxu0 %v626
    %657 = vmatpush.bf16.msra.mxu0 %v624
    %658 = vmatpush.bf16.msra.mxu0 %v622
    %659 = vmatpush.bf16.msra.mxu0 %v620
    %660 = vmatmul.bf16.gmra.mxu0 %v549
    %v661 = vpop.f32.mrf.mxu0
    %v662 = vadd.f32 %v568, %v661
    %v663 = vpop.f32.mrf.mxu0
    %664 = vdwg.mxu0
    %665 = vmatpush.bf16.msra.mxu0 %v635
    %666 = vmatpush.bf16.msra.mxu0 %v633
    %667 = vmatpush.bf16.msra.mxu0 %v631
    %668 = vmatpush.bf16.msra.mxu0 %v629
    %669 = vmatpush.bf16.msra.mxu0 %v627
    %670 = vmatpush.bf16.msra.mxu0 %v625
    %671 = vmatpush.bf16.msra.mxu0 %v623
    %672 = vmatpush.bf16.msra.mxu0 %v621
    %673 = vmatmul.bf16.gmra.mxu0 %v549
    %v674 = vpop.f32.mrf.mxu0
    %v675 = vadd.f32 %v569, %v674
    %v676 = vpop.f32.mrf.mxu0
    %677 = vdwg.mxu0
    %678 = vst [vmem:[#allocation14] sm:$0xff] %v662
    %v679 = vmax.f32 %v675, 0.0
    %v680 = vand.u32 2147483647, %v675
    %v681 = vsub.f32 0.0, %v680
    %v682 = vmul.f32 %v681, 1.442695
    %v683 = vpow.pop %v682
    %v684 = vadd.f32 %v683, 1.0
    %v685 = vlog2.pop %v684
    %v686 = vmul.f32 %v685, 0.6931472
    %v687 = vadd.f32 %v679, %v686
    %688 = vst [vmem:[#allocation14 + $0x8] sm:$0xff] %v687
    // Predicated region
    $region78: #{tpu_custom_call.1} parent=1 // pred_check
      _
    $region79: #{tpu_custom_call.1} parent=1 // pred_check_branch
      %690 = sbr.rel (0) target = $region81
    $region80: #{tpu_custom_call.1} parent=1 // pred_region
      %692 = vsyncadd [#allocation4], 0
      %s694 = sshll.u32 [#allocation14], 4
      %s695 = int_to_ptr.vmem [resolvable:$true] %s694
      %s696 = sshll.u32 %s12, 4
      %s697 = int_to_ptr.hbm [resolvable:$true] %s696
      %699 = dma.vmem_to_hbm [thread:$0]  %s695, 256, %s697, [#allocation4]
    $region81: #{tpu_custom_call.1} parent=1 // pred_fallthru
      _
    // Predicated region
    $region82: #{tpu_custom_call.1} parent=1 // pred_check
      _
    $region83: #{tpu_custom_call.1} parent=1 // pred_check_branch
      %701 = sbr.rel (0) target = $region85
    $region84: #{tpu_custom_call.1} parent=1 // pred_region
      %703 = dma.done [#allocation4], 256
    $region85: #{tpu_custom_call.1} parent=1 // pred_fallthru
      _
    %704 = vsyncpa [#allocation3], 1
    %705 = vsyncpa [#allocation6], 1
    %706 = vsyncpa [#allocation9], 1
    %707 = vsyncpa [#allocation12], 1
    %708 = vsyncpa [#allocation4], 1

</llo_original>
